<compile_context>
chip_gen: v7x
topology: tpu7x:2x2x1
jax: 0.10.0
libtpu: 0.0.40
codegen_flags: <defaults>
</compile_context>

<pallas_src>
import jax
import jax.numpy as jnp
import numpy as np
from jax import lax
from jax.experimental import pallas as pl
from jax.experimental.pallas import tpu as pltpu


# -----------------------------------------------------------------------------
# Kernel 1: 3x3 "same" conv as a single matmul over channel-major patches.
#   patches: (B, 9*Cin, HW)   bf16   (tap-major rows: row = tap*Cin + cin)
#   w_mat  : (Cout, 9*Cin)    bf16
#   bias   : (Cout, 1)        f32
#   out    : (B, Cout, HW)    f32    (HW on lanes -> lane-dense stores)
# -----------------------------------------------------------------------------
def _conv3x3_kernel(p_ref, w_ref, b_ref, out_ref):
    acc = jnp.dot(w_ref[...], p_ref[0], preferred_element_type=jnp.float32)
    out_ref[0] = (acc + b_ref[...]).astype(out_ref.dtype)


def conv3x3_cmaj(patches, w_mat, bias_col, *, tile_hw=None):
    B, K, HW = patches.shape
    Cout = w_mat.shape[0]
    if tile_hw is None:
        tile_hw = min(HW, 2048)          # keep VMEM bounded at large resolutions
    grid = (B, pl.cdiv(HW, tile_hw))
    return pl.pallas_call(
        _conv3x3_kernel,
        out_shape=jax.ShapeDtypeStruct((B, Cout, HW), jnp.float32),
        grid=grid,
        in_specs=[
            pl.BlockSpec((1, K, tile_hw), lambda b, t: (b, 0, t)),
            pl.BlockSpec((Cout, K), lambda b, t: (0, 0)),
            pl.BlockSpec((Cout, 1), lambda b, t: (0, 0)),
        ],
        out_specs=pl.BlockSpec((1, Cout, tile_hw), lambda b, t: (b, 0, t)),
        compiler_params=pltpu.CompilerParams(
            dimension_semantics=("parallel", "parallel")),
    )(patches, w_mat, bias_col)


# -----------------------------------------------------------------------------
# Kernel 2: fused conv_2 (Cout=1, VPU) + exposure masking + Mutual_Attention,
# one batch element per grid step, channel-major.
#   p2   : (1, 9*Cy, HW)  bf16  -> conv_2 patches of conv_1's output
#   x_c  : (1, Cx, HW)    f32   -> multiplied by the exposure map (key/value src)
#   y_c  : (1, Cy, HW)    f32   -> query source
#   w2c  : (9*Cy, 1) f32, b2 : (1,1) f32
#   wq/wk/wv/wp : (C, C)  bf16  (torch conv1x1 weights used directly, no transpose)
#   temp_col : (C, 1) f32 (per-head temperature broadcast to channels)
#   hbias    : (C, C) f32 (0 on the per-head diagonal blocks, -1e30 off-block)
#   out  : (1, C, HW) f32
# -----------------------------------------------------------------------------
def _fused_mask_attn_kernel(p2_ref, x_ref, y_ref, w2_ref, b2_ref,
                            wq_ref, wk_ref, wv_ref, wp_ref,
                            temp_ref, hbias_ref, out_ref):
    # conv_2 (single output channel) on the VPU/XLU; mask stays in VMEM only.
    p2 = p2_ref[0].astype(jnp.float32)                               # (9*Cy, HW)
    mask = jnp.sum(p2 * w2_ref[...], axis=0, keepdims=True) + b2_ref[...]  # (1, HW)
    mapped = x_ref[0] * mask                                         # (Cx, HW)

    y_b = y_ref[0].astype(jnp.bfloat16)
    m_b = mapped.astype(jnp.bfloat16)
    q = jnp.dot(wq_ref[...], y_b, preferred_element_type=jnp.float32)   # (C, HW)
    k = jnp.dot(wk_ref[...], m_b, preferred_element_type=jnp.float32)
    v = jnp.dot(wv_ref[...], m_b, preferred_element_type=jnp.float32)

    # L2-normalize every channel over the spatial (lane) axis == torch dim=-1.
    eps2 = jnp.float32(1e-24)
    qn = q * lax.rsqrt(jnp.maximum(jnp.sum(q * q, axis=1, keepdims=True), eps2))
    kn = k * lax.rsqrt(jnp.maximum(jnp.sum(k * k, axis=1, keepdims=True), eps2))

    # Folded multi-head gram: g[i, j] = sum_s qn[i, s] * kn[j, s]
    g = lax.dot_general(qn.astype(jnp.bfloat16), kn.astype(jnp.bfloat16),
                        (((1,), (1,)), ((), ())),
                        preferred_element_type=jnp.float32)          # (C, C)
    g = g * temp_ref[...] + hbias_ref[...]                           # temp + head mask
    g = g - jnp.max(g, axis=1, keepdims=True)                        # softmax over j
    e = jnp.exp(g)
    attn = e * pl.reciprocal(jnp.sum(e, axis=1, keepdims=True), approx=True)

    o = jnp.dot(attn.astype(jnp.bfloat16), v.astype(jnp.bfloat16),
                preferred_element_type=jnp.float32)                  # (C, HW)
    out = jnp.dot(wp_ref[...], o.astype(jnp.bfloat16),
                  preferred_element_type=jnp.float32)                # project_out
    out_ref[0] = out.astype(out_ref.dtype)


def fused_mask_attention(p2, x_c, y_c, params):
    B, K2, HW = p2.shape
    Cx = x_c.shape[1]
    C = y_c.shape[1]
    return pl.pallas_call(
        _fused_mask_attn_kernel,
        out_shape=jax.ShapeDtypeStruct((B, C, HW), jnp.float32),
        grid=(B,),
        in_specs=[
            pl.BlockSpec((1, K2, HW), lambda b: (b, 0, 0)),
            pl.BlockSpec((1, Cx, HW), lambda b: (b, 0, 0)),
            pl.BlockSpec((1, C, HW), lambda b: (b, 0, 0)),
            pl.BlockSpec((K2, 1), lambda b: (0, 0)),
            pl.BlockSpec((1, 1), lambda b: (0, 0)),
            pl.BlockSpec((C, C), lambda b: (0, 0)),
            pl.BlockSpec((C, C), lambda b: (0, 0)),
            pl.BlockSpec((C, C), lambda b: (0, 0)),
            pl.BlockSpec((C, C), lambda b: (0, 0)),
            pl.BlockSpec((C, 1), lambda b: (0, 0)),
            pl.BlockSpec((C, C), lambda b: (0, 0)),
        ],
        out_specs=pl.BlockSpec((1, C, HW), lambda b: (b, 0, 0)),
        compiler_params=pltpu.CompilerParams(dimension_semantics=("parallel",)),
    )(p2, x_c, y_c, params["w2c"], params["b2r"],
      params["wq_b"], params["wk_b"], params["wv_b"], params["wp_b"],
      params["temp_col"], params["head_bias"])


# ----------------------------- glue (plain JAX) ------------------------------
def _im2col3x3_cmaj(x_nchw):
    """(B, C, H, W) -> (B, 9*C, H*W), rows ordered tap-major (t = ky*3+kx)."""
    B, C, H, W = x_nchw.shape
    xp = jnp.pad(x_nchw, ((0, 0), (0, 0), (1, 1), (1, 1)))
    taps = [xp[:, :, ky:ky + H, kx:kx + W] for ky in range(3) for kx in range(3)]
    return jnp.concatenate(taps, axis=1).reshape(B, 9 * C, H * W)


def exposure_mask_forward(params, x_nchw, y_nchw):
    B, Cx, H, W = x_nchw.shape
    Cy = y_nchw.shape[1]
    HW = H * W
    cat = jnp.concatenate([x_nchw, y_nchw], axis=1)
    # conv_1 : (dim_x + dim_y) -> dim_y, 3x3, pad 1 (single K=9*Cin matmul)
    p1 = _im2col3x3_cmaj(cat).astype(jnp.bfloat16)
    m1 = conv3x3_cmaj(p1, params["w1m"], params["b1c"])          # (B, Cy, HW) f32
    # conv_2 + exposure masking + attention, fused; the (B,1,H,W) map never
    # leaves VMEM.
    p2 = _im2col3x3_cmaj(m1.reshape(B, Cy, H, W)).astype(jnp.bfloat16)
    x_c = x_nchw.reshape(B, Cx, HW)
    y_c = y_nchw.reshape(B, Cy, HW)
    out_c = fused_mask_attention(p2, x_c, y_c, params)           # (B, Cy, HW)
    return out_c.reshape(B, Cy, H, W)                            # already NCHW


# -------------------------- deterministic parameters -------------------------
def init_params(key, dim_x, dim_y, num_heads):
    ks = jax.random.split(key, 8)
    cin1 = dim_x + dim_y
    w1 = 0.1 * jax.random.normal(ks[0], (dim_y, cin1, 3, 3), jnp.float32)
    b1 = 0.05 * jax.random.normal(ks[1], (dim_y,), jnp.float32)
    w2 = 0.1 * jax.random.normal(ks[2], (1, dim_y, 3, 3), jnp.float32)
    b2 = 0.05 * jax.random.normal(ks[3], (1,), jnp.float32)
    wq = 0.1 * jax.random.normal(ks[4], (dim_y, dim_y), jnp.float32)
    wk = 0.1 * jax.random.normal(ks[5], (dim_y, dim_y), jnp.float32)
    wv = 0.1 * jax.random.normal(ks[6], (dim_y, dim_y), jnp.float32)
    wp = 0.1 * jax.random.normal(ks[7], (dim_y, dim_y), jnp.float32)
    temp = jnp.ones((num_heads,), jnp.float32)                   # torch init: ones

    ch = dim_y // num_heads
    hid = jnp.arange(dim_y) // ch
    head_bias = jnp.where(hid[:, None] == hid[None, :],
                          jnp.float32(0.0), jnp.float32(-1e30))

    return {
        # torch-layout copies (for the pure-JAX reference)
        "w1_oihw": w1, "b1_vec": b1, "w2_oihw": w2, "b2_vec": b2,
        "wq": wq, "wk": wk, "wv": wv, "wp": wp, "temp_vec": temp,
        # kernel layouts (channel-major; MXU operands in bf16)
        "w1m": jnp.transpose(w1, (0, 2, 3, 1)).reshape(dim_y, 9 * cin1)
                  .astype(jnp.bfloat16),
        "b1c": b1.reshape(dim_y, 1),
        "w2c": jnp.transpose(w2, (2, 3, 1, 0)).reshape(9 * dim_y, 1),
        "b2r": b2.reshape(1, 1),
        "wq_b": wq.astype(jnp.bfloat16), "wk_b": wk.astype(jnp.bfloat16),
        "wv_b": wv.astype(jnp.bfloat16), "wp_b": wp.astype(jnp.bfloat16),
        "temp_col": jnp.repeat(temp, ch).reshape(dim_y, 1),
        "head_bias": head_bias.astype(jnp.float32),
    }


# ----------------------------- pure-JAX reference ----------------------------
def ref_forward(params, x, y, num_heads):
    dn = ("NCHW", "OIHW", "NCHW")
    hp = lax.Precision.HIGHEST
    b1 = params["b1_vec"][None, :, None, None]
    b2 = params["b2_vec"][None, :, None, None]
    cat = jnp.concatenate([x, y], axis=1)
    m = lax.conv_general_dilated(cat, params["w1_oihw"], (1, 1), "SAME",
                                 dimension_numbers=dn, precision=hp) + b1
    m = lax.conv_general_dilated(m, params["w2_oihw"], (1, 1), "SAME",
                                 dimension_numbers=dn, precision=hp) + b2
    mapped = x * m
    B, C, H, W = y.shape
    ch = C // num_heads
    conv1x1 = lambda z, w: jnp.einsum("oc,bchw->bohw", w, z, precision=hp)
    q = conv1x1(y, params["wq"]).reshape(B, num_heads, ch, H * W)
    k = conv1x1(mapped, params["wk"]).reshape(B, num_heads, ch, H * W)
    v = conv1x1(mapped, params["wv"]).reshape(B, num_heads, ch, H * W)
    l2n = lambda z: z / jnp.maximum(
        jnp.sqrt(jnp.sum(z * z, axis=-1, keepdims=True)), 1e-12)
    q, k = l2n(q), l2n(k)
    attn = jnp.einsum("bhcs,bhds->bhcd", q, k,
                      precision=hp) * params["temp_vec"][None, :, None, None]
    attn = jax.nn.softmax(attn, axis=-1)
    out = jnp.einsum("bhcd,bhds->bhcs", attn, v,
                     precision=hp).reshape(B, C, H, W)
    return conv1x1(out, params["wp"])


if __name__ == "__main__":
    # ExposureMask requires dim_x == dim_y for its own forward to be consistent
    # (mapped must match y's shape inside Mutual_Attention).
    dim_x = dim_y = 8
    num_heads = 2
    B, H, W = 2, 16, 16

    key = jax.random.PRNGKey(0)
    kx_, ky_, kp_ = jax.random.split(key, 3)
    x = jax.random.normal(kx_, (B, dim_x, H, W), jnp.float32)
    y = jax.random.normal(ky_, (B, dim_y, H, W), jnp.float32)
    params = init_params(kp_, dim_x, dim_y, num_heads)

    fwd = jax.jit(exposure_mask_forward)
    out = jax.block_until_ready(fwd(params, x, y))
    ref = jax.block_until_ready(ref_forward(params, x, y, num_heads))

    assert out.shape == (B, dim_y, H, W)
    # bf16 MXU operands (vs the f32 'highest'-precision reference) -> looser tol.
    np.testing.assert_allclose(np.asarray(out), np.asarray(ref),
                               atol=2e-2, rtol=2e-2)
    print("KERNEL_OK")
</pallas_src>

<mosaic_0001>
module attributes {stable_mosaic.version = 11 : i64} {
  func.func @_conv3x3_kernel(%arg0: i32, %arg1: i32, %arg2: memref<1x144x256xbf16, #tpu.memory_space<vmem>>, %arg3: memref<8x144xbf16, #tpu.memory_space<vmem>>, %arg4: memref<8x1xf32, #tpu.memory_space<vmem>>, %arg5: memref<1x8x256xf32, #tpu.memory_space<vmem>>) attributes {dimension_semantics = [#tpu.dimension_semantics<parallel>, #tpu.dimension_semantics<parallel>], iteration_bounds = array<i64: 2, 1>, scalar_prefetch = 0 : i64, scratch_operands = 0 : i64, tpu.core_type = #tpu.core_type<tc>, window_params = [{transform_indices = @transform_0, window_bounds = array<i64: 1, 144, 256>}, {pipeline_mode = #tpu.pipeline_mode<synchronous>, transform_indices = @transform_1, window_bounds = array<i64: 8, 144>}, {pipeline_mode = #tpu.pipeline_mode<synchronous>, transform_indices = @transform_2, window_bounds = array<i64: 8, 1>}, {transform_indices = @transform_3, window_bounds = array<i64: 1, 8, 256>}]} {
    %c0 = arith.constant 0 : index
    %c0_0 = arith.constant 0 : index
    %0 = vector.load %arg3[%c0, %c0_0] : memref<8x144xbf16, #tpu.memory_space<vmem>>, vector<8x144xbf16>
    %c0_1 = arith.constant 0 : index
    %c0_2 = arith.constant 0 : index
    %c0_3 = arith.constant 0 : index
    %1 = vector.load %arg2[%c0_1, %c0_2, %c0_3] : memref<1x144x256xbf16, #tpu.memory_space<vmem>>, vector<1x144x256xbf16>
    %2 = vector.shape_cast %1 : vector<1x144x256xbf16> to vector<144x256xbf16>
    %cst = arith.constant dense<0.000000e+00> : vector<8x256xf32>
    %3 = tpu.matmul %0, %2, %cst {dimension_numbers = #tpu.dot_dimension_numbers<[1], [0], [0], [1], [0, 0, 1, 1], [], []>} : vector<8x144xbf16>, vector<144x256xbf16>, vector<8x256xf32> -> vector<8x256xf32>
    %c0_4 = arith.constant 0 : index
    %c0_5 = arith.constant 0 : index
    %4 = vector.load %arg4[%c0_4, %c0_5] : memref<8x1xf32, #tpu.memory_space<vmem>>, vector<8x1xf32>
    %5 = vector.broadcast %4 : vector<8x1xf32> to vector<8x256xf32>
    %6 = arith.addf %3, %5 : vector<8x256xf32>
    %c0_6 = arith.constant 0 : index
    %c0_7 = arith.constant 0 : index
    %c0_8 = arith.constant 0 : index
    %7 = vector.load %arg5[%c0_6, %c0_7, %c0_8] : memref<1x8x256xf32, #tpu.memory_space<vmem>>, vector<1x8x256xf32>
    %8 = vector.shape_cast %7 : vector<1x8x256xf32> to vector<8x256xf32>
    %9 = vector.shape_cast %6 : vector<8x256xf32> to vector<1x8x256xf32>
    tpu.vector_store %arg5[%c0_6, %c0_7, %c0_8], %9 {strides = array<i32>} : memref<1x8x256xf32, #tpu.memory_space<vmem>>, vector<1x8x256xf32>,
    return
  }
  func.func @transform_0(%arg0: i32, %arg1: i32) -> (i32, i32, i32) {
    %c0_i32 = arith.constant 0 : i32
    %c0_i32_0 = arith.constant 0 : i32
    return %arg0, %c0_i32, %arg1 : i32, i32, i32
  }
  func.func @transform_1(%arg0: i32, %arg1: i32) -> (i32, i32) {
    %c0_i32 = arith.constant 0 : i32
    %c0_i32_0 = arith.constant 0 : i32
    %c0_i32_1 = arith.constant 0 : i32
    return %c0_i32, %c0_i32_0 : i32, i32
  }
  func.func @transform_2(%arg0: i32, %arg1: i32) -> (i32, i32) {
    %c0_i32 = arith.constant 0 : i32
    %c0_i32_0 = arith.constant 0 : i32
    %c0_i32_1 = arith.constant 0 : i32
    return %c0_i32, %c0_i32_0 : i32, i32
  }
  func.func @transform_3(%arg0: i32, %arg1: i32) -> (i32, i32, i32) {
    %c0_i32 = arith.constant 0 : i32
    %c0_i32_0 = arith.constant 0 : i32
    return %arg0, %c0_i32, %arg1 : i32, i32, i32
  }
}

module attributes {stable_mosaic.version = 11 : i64} {
  func.func @_fused_mask_attn_kernel(%arg0: i32, %arg1: memref<1x72x256xbf16, #tpu.memory_space<vmem>>, %arg2: memref<1x8x256xf32, #tpu.memory_space<vmem>>, %arg3: memref<1x8x256xf32, #tpu.memory_space<vmem>>, %arg4: memref<72x1xf32, #tpu.memory_space<vmem>>, %arg5: memref<1x1xf32, #tpu.memory_space<vmem>>, %arg6: memref<8x8xbf16, #tpu.memory_space<vmem>>, %arg7: memref<8x8xbf16, #tpu.memory_space<vmem>>, %arg8: memref<8x8xbf16, #tpu.memory_space<vmem>>, %arg9: memref<8x8xbf16, #tpu.memory_space<vmem>>, %arg10: memref<8x1xf32, #tpu.memory_space<vmem>>, %arg11: memref<8x8xf32, #tpu.memory_space<vmem>>, %arg12: memref<1x8x256xf32, #tpu.memory_space<vmem>>) attributes {dimension_semantics = [#tpu.dimension_semantics<parallel>], iteration_bounds = array<i64: 2>, scalar_prefetch = 0 : i64, scratch_operands = 0 : i64, tpu.core_type = #tpu.core_type<tc>, window_params = [{transform_indices = @transform_0, window_bounds = array<i64: 1, 72, 256>}, {transform_indices = @transform_1, window_bounds = array<i64: 1, 8, 256>}, {transform_indices = @transform_2, window_bounds = array<i64: 1, 8, 256>}, {pipeline_mode = #tpu.pipeline_mode<synchronous>, transform_indices = @transform_3, window_bounds = array<i64: 72, 1>}, {pipeline_mode = #tpu.pipeline_mode<synchronous>, transform_indices = @transform_4, window_bounds = array<i64: 1, 1>}, {pipeline_mode = #tpu.pipeline_mode<synchronous>, transform_indices = @transform_5, window_bounds = array<i64: 8, 8>}, {pipeline_mode = #tpu.pipeline_mode<synchronous>, transform_indices = @transform_6, window_bounds = array<i64: 8, 8>}, {pipeline_mode = #tpu.pipeline_mode<synchronous>, transform_indices = @transform_7, window_bounds = array<i64: 8, 8>}, {pipeline_mode = #tpu.pipeline_mode<synchronous>, transform_indices = @transform_8, window_bounds = array<i64: 8, 8>}, {pipeline_mode = #tpu.pipeline_mode<synchronous>, transform_indices = @transform_9, window_bounds = array<i64: 8, 1>}, {pipeline_mode = #tpu.pipeline_mode<synchronous>, transform_indices = @transform_10, window_bounds = array<i64: 8, 8>}, {transform_indices = @transform_11, window_bounds = array<i64: 1, 8, 256>}]} {
    %c0 = arith.constant 0 : index
    %c0_0 = arith.constant 0 : index
    %c0_1 = arith.constant 0 : index
    %0 = vector.load %arg1[%c0, %c0_0, %c0_1] : memref<1x72x256xbf16, #tpu.memory_space<vmem>>, vector<1x72x256xbf16>
    %1 = vector.shape_cast %0 : vector<1x72x256xbf16> to vector<72x256xbf16>
    %2 = arith.extf %1 : vector<72x256xbf16> to vector<72x256xf32>
    %c0_2 = arith.constant 0 : index
    %c0_3 = arith.constant 0 : index
    %3 = vector.load %arg4[%c0_2, %c0_3] : memref<72x1xf32, #tpu.memory_space<vmem>>, vector<72x1xf32>
    %4 = vector.broadcast %3 : vector<72x1xf32> to vector<72x256xf32>
    %5 = arith.mulf %2, %4 : vector<72x256xf32>
    %cst = arith.constant dense<0.000000e+00> : vector<256xf32>
    %6 = vector.multi_reduction <add>, %5, %cst [0] : vector<72x256xf32> to vector<256xf32>
    %7 = vector.shape_cast %6 : vector<256xf32> to vector<1x256xf32>
    %c0_4 = arith.constant 0 : index
    %c0_5 = arith.constant 0 : index
    %8 = vector.load %arg5[%c0_4, %c0_5] : memref<1x1xf32, #tpu.memory_space<vmem>>, vector<1x1xf32>
    %9 = vector.broadcast %8 : vector<1x1xf32> to vector<1x256xf32>
    %10 = arith.addf %7, %9 : vector<1x256xf32>
    %c0_6 = arith.constant 0 : index
    %c0_7 = arith.constant 0 : index
    %c0_8 = arith.constant 0 : index
    %11 = vector.load %arg2[%c0_6, %c0_7, %c0_8] : memref<1x8x256xf32, #tpu.memory_space<vmem>>, vector<1x8x256xf32>
    %12 = vector.shape_cast %11 : vector<1x8x256xf32> to vector<8x256xf32>
    %13 = vector.broadcast %10 : vector<1x256xf32> to vector<8x256xf32>
    %14 = arith.mulf %12, %13 : vector<8x256xf32>
    %c0_9 = arith.constant 0 : index
    %c0_10 = arith.constant 0 : index
    %c0_11 = arith.constant 0 : index
    %15 = vector.load %arg3[%c0_9, %c0_10, %c0_11] : memref<1x8x256xf32, #tpu.memory_space<vmem>>, vector<1x8x256xf32>
    %16 = vector.shape_cast %15 : vector<1x8x256xf32> to vector<8x256xf32>
    %17 = arith.truncf %16 : vector<8x256xf32> to vector<8x256xbf16>
    %18 = arith.truncf %14 : vector<8x256xf32> to vector<8x256xbf16>
    %c0_12 = arith.constant 0 : index
    %c0_13 = arith.constant 0 : index
    %19 = vector.load %arg6[%c0_12, %c0_13] : memref<8x8xbf16, #tpu.memory_space<vmem>>, vector<8x8xbf16>
    %cst_14 = arith.constant dense<0.000000e+00> : vector<8x256xf32>
    %20 = tpu.matmul %19, %17, %cst_14 {dimension_numbers = #tpu.dot_dimension_numbers<[1], [0], [0], [1], [0, 0, 1, 1], [], []>} : vector<8x8xbf16>, vector<8x256xbf16>, vector<8x256xf32> -> vector<8x256xf32>
    %c0_15 = arith.constant 0 : index
    %c0_16 = arith.constant 0 : index
    %21 = vector.load %arg7[%c0_15, %c0_16] : memref<8x8xbf16, #tpu.memory_space<vmem>>, vector<8x8xbf16>
    %cst_17 = arith.constant dense<0.000000e+00> : vector<8x256xf32>
    %22 = tpu.matmul %21, %18, %cst_17 {dimension_numbers = #tpu.dot_dimension_numbers<[1], [0], [0], [1], [0, 0, 1, 1], [], []>} : vector<8x8xbf16>, vector<8x256xbf16>, vector<8x256xf32> -> vector<8x256xf32>
    %c0_18 = arith.constant 0 : index
    %c0_19 = arith.constant 0 : index
    %23 = vector.load %arg8[%c0_18, %c0_19] : memref<8x8xbf16, #tpu.memory_space<vmem>>, vector<8x8xbf16>
    %cst_20 = arith.constant dense<0.000000e+00> : vector<8x256xf32>
    %24 = tpu.matmul %23, %18, %cst_20 {dimension_numbers = #tpu.dot_dimension_numbers<[1], [0], [0], [1], [0, 0, 1, 1], [], []>} : vector<8x8xbf16>, vector<8x256xbf16>, vector<8x256xf32> -> vector<8x256xf32>
    %25 = arith.mulf %20, %20 : vector<8x256xf32>
    %cst_21 = arith.constant dense<0.000000e+00> : vector<8xf32>
    %26 = vector.multi_reduction <add>, %25, %cst_21 [1] : vector<8x256xf32> to vector<8xf32>
    %27 = vector.shape_cast %26 : vector<8xf32> to vector<8x1xf32>
    %cst_22 = arith.constant 1.000000e-24 : f32
    %28 = vector.broadcast %cst_22 : f32 to vector<8x1xf32>
    %29 = arith.maximumf %27, %28 : vector<8x1xf32>
    %30 = math.rsqrt %29 : vector<8x1xf32>
    %31 = vector.broadcast %30 : vector<8x1xf32> to vector<8x256xf32>
    %32 = arith.mulf %20, %31 : vector<8x256xf32>
    %33 = arith.mulf %22, %22 : vector<8x256xf32>
    %cst_23 = arith.constant dense<0.000000e+00> : vector<8xf32>
    %34 = vector.multi_reduction <add>, %33, %cst_23 [1] : vector<8x256xf32> to vector<8xf32>
    %35 = vector.shape_cast %34 : vector<8xf32> to vector<8x1xf32>
    %cst_24 = arith.constant 1.000000e-24 : f32
    %36 = vector.broadcast %cst_24 : f32 to vector<8x1xf32>
    %37 = arith.maximumf %35, %36 : vector<8x1xf32>
    %38 = math.rsqrt %37 : vector<8x1xf32>
    %39 = vector.broadcast %38 : vector<8x1xf32> to vector<8x256xf32>
    %40 = arith.mulf %22, %39 : vector<8x256xf32>
    %41 = arith.truncf %32 : vector<8x256xf32> to vector<8x256xbf16>
    %42 = arith.truncf %40 : vector<8x256xf32> to vector<8x256xbf16>
    %cst_25 = arith.constant dense<0.000000e+00> : vector<8x8xf32>
    %43 = tpu.matmul %41, %42, %cst_25 {dimension_numbers = #tpu.dot_dimension_numbers<[1], [1], [0], [0], [0, 0, 1, 0], [], []>} : vector<8x256xbf16>, vector<8x256xbf16>, vector<8x8xf32> -> vector<8x8xf32>
    %c0_26 = arith.constant 0 : index
    %c0_27 = arith.constant 0 : index
    %44 = vector.load %arg10[%c0_26, %c0_27] : memref<8x1xf32, #tpu.memory_space<vmem>>, vector<8x1xf32>
    %45 = vector.broadcast %44 : vector<8x1xf32> to vector<8x8xf32>
    %46 = arith.mulf %43, %45 : vector<8x8xf32>
    %c0_28 = arith.constant 0 : index
    %c0_29 = arith.constant 0 : index
    %47 = vector.load %arg11[%c0_28, %c0_29] : memref<8x8xf32, #tpu.memory_space<vmem>>, vector<8x8xf32>
    %48 = arith.addf %46, %47 : vector<8x8xf32>
    %cst_30 = arith.constant dense<0xFF800000> : vector<8xf32>
    %49 = vector.multi_reduction <maximumf>, %48, %cst_30 [1] : vector<8x8xf32> to vector<8xf32>
    %50 = vector.shape_cast %49 : vector<8xf32> to vector<8x1xf32>
    %51 = vector.broadcast %50 : vector<8x1xf32> to vector<8x8xf32>
    %52 = arith.subf %48, %51 : vector<8x8xf32>
    %53 = math.exp %52 : vector<8x8xf32>
    %cst_31 = arith.constant dense<0.000000e+00> : vector<8xf32>
    %54 = vector.multi_reduction <add>, %53, %cst_31 [1] : vector<8x8xf32> to vector<8xf32>
    %55 = vector.shape_cast %54 : vector<8xf32> to vector<8x1xf32>
    %56 = tpu.reciprocal %55 {approx = true} : vector<8x1xf32> -> vector<8x1xf32>
    %57 = vector.broadcast %56 : vector<8x1xf32> to vector<8x8xf32>
    %58 = arith.mulf %53, %57 : vector<8x8xf32>
    %59 = arith.truncf %58 : vector<8x8xf32> to vector<8x8xbf16>
    %60 = arith.truncf %24 : vector<8x256xf32> to vector<8x256xbf16>
    %cst_32 = arith.constant dense<0.000000e+00> : vector<8x256xf32>
    %61 = tpu.matmul %59, %60, %cst_32 {dimension_numbers = #tpu.dot_dimension_numbers<[1], [0], [0], [1], [0, 0, 1, 1], [], []>} : vector<8x8xbf16>, vector<8x256xbf16>, vector<8x256xf32> -> vector<8x256xf32>
    %c0_33 = arith.constant 0 : index
    %c0_34 = arith.constant 0 : index
    %62 = vector.load %arg9[%c0_33, %c0_34] : memref<8x8xbf16, #tpu.memory_space<vmem>>, vector<8x8xbf16>
    %63 = arith.truncf %61 : vector<8x256xf32> to vector<8x256xbf16>
    %cst_35 = arith.constant dense<0.000000e+00> : vector<8x256xf32>
    %64 = tpu.matmul %62, %63, %cst_35 {dimension_numbers = #tpu.dot_dimension_numbers<[1], [0], [0], [1], [0, 0, 1, 1], [], []>} : vector<8x8xbf16>, vector<8x256xbf16>, vector<8x256xf32> -> vector<8x256xf32>
    %c0_36 = arith.constant 0 : index
    %c0_37 = arith.constant 0 : index
    %c0_38 = arith.constant 0 : index
    %65 = vector.load %arg12[%c0_36, %c0_37, %c0_38] : memref<1x8x256xf32, #tpu.memory_space<vmem>>, vector<1x8x256xf32>
    %66 = vector.shape_cast %65 : vector<1x8x256xf32> to vector<8x256xf32>
    %67 = vector.shape_cast %64 : vector<8x256xf32> to vector<1x8x256xf32>
    tpu.vector_store %arg12[%c0_36, %c0_37, %c0_38], %67 {strides = array<i32>} : memref<1x8x256xf32, #tpu.memory_space<vmem>>, vector<1x8x256xf32>,
    return
  }
  func.func @transform_0(%arg0: i32) -> (i32, i32, i32) {
    %c0_i32 = arith.constant 0 : i32
    %c0_i32_0 = arith.constant 0 : i32
    %c0_i32_1 = arith.constant 0 : i32
    return %arg0, %c0_i32, %c0_i32_0 : i32, i32, i32
  }
  func.func @transform_1(%arg0: i32) -> (i32, i32, i32) {
    %c0_i32 = arith.constant 0 : i32
    %c0_i32_0 = arith.constant 0 : i32
    %c0_i32_1 = arith.constant 0 : i32
    return %arg0, %c0_i32, %c0_i32_0 : i32, i32, i32
  }
  func.func @transform_2(%arg0: i32) -> (i32, i32, i32) {
    %c0_i32 = arith.constant 0 : i32
    %c0_i32_0 = arith.constant 0 : i32
    %c0_i32_1 = arith.constant 0 : i32
    return %arg0, %c0_i32, %c0_i32_0 : i32, i32, i32
  }
  func.func @transform_3(%arg0: i32) -> (i32, i32) {
    %c0_i32 = arith.constant 0 : i32
    %c0_i32_0 = arith.constant 0 : i32
    %c0_i32_1 = arith.constant 0 : i32
    return %c0_i32, %c0_i32_0 : i32, i32
  }
  func.func @transform_4(%arg0: i32) -> (i32, i32) {
    %c0_i32 = arith.constant 0 : i32
    %c0_i32_0 = arith.constant 0 : i32
    %c0_i32_1 = arith.constant 0 : i32
    return %c0_i32, %c0_i32_0 : i32, i32
  }
  func.func @transform_5(%arg0: i32) -> (i32, i32) {
    %c0_i32 = arith.constant 0 : i32
    %c0_i32_0 = arith.constant 0 : i32
    %c0_i32_1 = arith.constant 0 : i32
    return %c0_i32, %c0_i32_0 : i32, i32
  }
  func.func @transform_6(%arg0: i32) -> (i32, i32) {
    %c0_i32 = arith.constant 0 : i32
    %c0_i32_0 = arith.constant 0 : i32
    %c0_i32_1 = arith.constant 0 : i32
    return %c0_i32, %c0_i32_0 : i32, i32
  }
  func.func @transform_7(%arg0: i32) -> (i32, i32) {
    %c0_i32 = arith.constant 0 : i32
    %c0_i32_0 = arith.constant 0 : i32
    %c0_i32_1 = arith.constant 0 : i32
    return %c0_i32, %c0_i32_0 : i32, i32
  }
  func.func @transform_8(%arg0: i32) -> (i32, i32) {
    %c0_i32 = arith.constant 0 : i32
    %c0_i32_0 = arith.constant 0 : i32
    %c0_i32_1 = arith.constant 0 : i32
    return %c0_i32, %c0_i32_0 : i32, i32
  }
  func.func @transform_9(%arg0: i32) -> (i32, i32) {
    %c0_i32 = arith.constant 0 : i32
    %c0_i32_0 = arith.constant 0 : i32
    %c0_i32_1 = arith.constant 0 : i32
    return %c0_i32, %c0_i32_0 : i32, i32
  }
  func.func @transform_10(%arg0: i32) -> (i32, i32) {
    %c0_i32 = arith.constant 0 : i32
    %c0_i32_0 = arith.constant 0 : i32
    %c0_i32_1 = arith.constant 0 : i32
    return %c0_i32, %c0_i32_0 : i32, i32
  }
  func.func @transform_11(%arg0: i32) -> (i32, i32, i32) {
    %c0_i32 = arith.constant 0 : i32
    %c0_i32_0 = arith.constant 0 : i32
    %c0_i32_1 = arith.constant 0 : i32
    return %arg0, %c0_i32, %c0_i32_0 : i32, i32, i32
  }
}

</mosaic_0001>

<llo_original>
// kernel: exposure_mask_forward.2
$region0: #{exposure_mask_forward.2}
  #allocation0 [shape = 'u32[]', space=smem, size = 0x4, offset = 0x4, fixed_abs, tag = 'smem constant byte address 0x4 - core index']
  #allocation1 [shape = 'u32[144,128]{1,0:T(1,128)}', space=vmem, size = 0x12000, scoped, tag = 'internal scratch']
  %s0 = inlined_call_operand.vmem [shape: bf16[2,144,256], index: 0, kind: input, shape index: {}]
  %s1 = inlined_call_operand.vmem [shape: bf16[8,144], index: 1, kind: input, shape index: {}]
  %s2 = inlined_call_operand.vmem [shape: f32[8,1], index: 2, kind: input, shape index: {}]
  %s3 = inlined_call_operand.vmem [shape: f32[2,8,256], index: 3, kind: output, shape index: {}]
  %s4 = sld [smem:[#allocation0]]
  $region45: #{exposure_mask_forward.2} parent=0
    _
  %s6 = ssub.s32 1, %s4
  %s7 = scalar_select 0, %s6, %s4
  loop: start=0, step=1, limit=4
  $region2: #{exposure_mask_forward.2} parent=0 // loop_pre_header
    _
  $region3: #{exposure_mask_forward.2} parent=0 // loop_header
    %s9 = sphi 0, %s13
    %p10 = scmp.ge.s32.totalorder %s9, 4
    %s16 = sphi 0, %s28
    %s17 = sphi 0, %s24
    %s18 = sphi 0, %s16
    %s19 = sphi 0, %s17
    %s20 = sphi 0, %s18
    %s21 = sphi 0, %s19
    %s33 = sphi 0, %s35
    %s36 = sphi 0, %s33
    %s37 = sphi 0, %s36
    %s53 = sphi 0, %s37
    %s57 = sphi 0, %s57
    %s59 = sphi 0, %s57
    %s60 = sphi 0, %s59
    %s74 = sphi 0, %s60
    %s78 = sphi 0, %s78
    %s80 = sphi 0, %s78
    %s81 = sphi 0, %s80
    %s95 = sphi 0, %s81
    %s103 = sphi 0, %s105
    %s106 = sphi 0, %s103
    %s107 = sphi 0, %s106
    %s123 = sphi 0, %s107
  $region4: #{exposure_mask_forward.2} parent=0 // loop_header_branch
    %12 = sbr.rel (%p10) target = $region8
  $region5: #{exposure_mask_forward.2} parent=0 // loop_body
    %s14 = ssub.s32 %s9, 1
    %s15 = ssub.s32 %s9, 2
    %s22 = sadd.s32 1, %s17
    %p23 = scmp.ge.s32.totalorder %s22, 1
    %s24 = scalar_select %p23, 0, %s22
    %s25 = sadd.s32 1, %s16
    %s26 = scalar_select %p23, %s25, %s16
    %p27 = scmp.ge.s32.totalorder %s26, 2
    %s28 = scalar_select %p27, 0, %s26
    %s29 = ssub.s32 %s16, %s28
    %s30 = ssub.s32 %s17, %s24
    %s31 = sor.u32 %s29, %s30
    %p32 = scmp.eq.s32.totalorder %s31, 0
    %s34 = sadd.s32 %s33, 1
    %s35 = scalar_select %p32, %s33, %s34
    %p38 = pneg %p32
    %p39 = scmp.eq.s32.totalorder %s9, 1
    %p40 = por %p38, %p39
    %p41 = scmp.ne.s32.totalorder %s33, %s36
    %p42 = scmp.eq.s32.totalorder %s9, 0
    %p43 = por %p41, %p42
    %p44 = scmp.ne.s32.totalorder %s33, %s36
    %p45 = scmp.eq.s32.totalorder %s14, 1
    %p46 = por %p44, %p45
    %p47 = scmp.ne.s32.totalorder %s36, %s37
    %p48 = scmp.eq.s32.totalorder %s14, 0
    %p49 = por %p47, %p48
    %p50 = scmp.ne.s32.totalorder %s36, %s37
    %p51 = scmp.eq.s32.totalorder %s15, 1
    %p52 = por %p50, %p51
    %p54 = scmp.ne.s32.totalorder %s37, %s53
    %p55 = scmp.eq.s32.totalorder %s15, 0
    %p56 = por %p54, %p55
    %s58 = sadd.s32 %s57, 1
    %p61 = scmp.eq.s32.totalorder %s9, 1
    %p62 = scmp.ne.s32.totalorder %s57, %s59
    %p63 = scmp.eq.s32.totalorder %s9, 0
    %p64 = por %p62, %p63
    %p65 = scmp.ne.s32.totalorder %s57, %s59
    %p66 = scmp.eq.s32.totalorder %s14, 1
    %p67 = por %p65, %p66
    %p68 = scmp.ne.s32.totalorder %s59, %s60
    %p69 = scmp.eq.s32.totalorder %s14, 0
    %p70 = por %p68, %p69
    %p71 = scmp.ne.s32.totalorder %s59, %s60
    %p72 = scmp.eq.s32.totalorder %s15, 1
    %p73 = por %p71, %p72
    %p75 = scmp.ne.s32.totalorder %s60, %s74
    %p76 = scmp.eq.s32.totalorder %s15, 0
    %p77 = por %p75, %p76
    %s79 = sadd.s32 %s78, 1
    %p82 = scmp.eq.s32.totalorder %s9, 1
    %p83 = scmp.ne.s32.totalorder %s78, %s80
    %p84 = scmp.eq.s32.totalorder %s9, 0
    %p85 = por %p83, %p84
    %p86 = scmp.ne.s32.totalorder %s78, %s80
    %p87 = scmp.eq.s32.totalorder %s14, 1
    %p88 = por %p86, %p87
    %p89 = scmp.ne.s32.totalorder %s80, %s81
    %p90 = scmp.eq.s32.totalorder %s14, 0
    %p91 = por %p89, %p90
    %p92 = scmp.ne.s32.totalorder %s80, %s81
    %p93 = scmp.eq.s32.totalorder %s15, 1
    %p94 = por %p92, %p93
    %p96 = scmp.ne.s32.totalorder %s81, %s95
    %p97 = scmp.eq.s32.totalorder %s15, 0
    %p98 = por %p96, %p97
    %s99 = ssub.s32 %s16, %s28
    %s100 = ssub.s32 %s17, %s24
    %s101 = sor.u32 %s99, %s100
    %p102 = scmp.eq.s32.totalorder %s101, 0
    %s104 = sadd.s32 %s103, 1
    %s105 = scalar_select %p102, %s103, %s104
    %p108 = pneg %p102
    %p109 = scmp.eq.s32.totalorder %s9, 1
    %p110 = por %p108, %p109
    %p111 = scmp.ne.s32.totalorder %s103, %s106
    %p112 = scmp.eq.s32.totalorder %s9, 0
    %p113 = por %p111, %p112
    %p114 = scmp.ne.s32.totalorder %s103, %s106
    %p115 = scmp.eq.s32.totalorder %s14, 1
    %p116 = por %p114, %p115
    %p117 = scmp.ne.s32.totalorder %s106, %s107
    %p118 = scmp.eq.s32.totalorder %s14, 0
    %p119 = por %p117, %p118
    %p120 = scmp.ne.s32.totalorder %s106, %s107
    %p121 = scmp.eq.s32.totalorder %s15, 1
    %p122 = por %p120, %p121
    %p124 = scmp.ne.s32.totalorder %s107, %s123
    %p125 = scmp.eq.s32.totalorder %s15, 0
    %p126 = por %p124, %p125
    %p127 = scmp.le.s32.totalorder 1, %s9
    %p128 = scmp.lt.s32.totalorder %s9, 3
    %p129 = pnand %p127, %p128
    %p130 = pneg %p129
    // Predicated region
    $region9: #{exposure_mask_forward.2} parent=5 // pred_check
      _
    $region10: #{exposure_mask_forward.2} parent=5 // pred_check_branch
      %132 = sbr.rel (%p129) target = $region12
    $region11: #{exposure_mask_forward.2} parent=5 // pred_region
      %s133 = ssub.s32 %s9, 1
      // Predicated region
      $region13: #{exposure_mask_forward.2} parent=11 // pred_check
        %p134 = pneg %p70
      $region14: #{exposure_mask_forward.2} parent=11 // pred_check_branch
        %136 = sbr.rel (%p134) target = $region16
      $region15: #{exposure_mask_forward.2} parent=11 // pred_region
        _
      $region16: #{exposure_mask_forward.2} parent=11 // pred_fallthru
        _
      // Predicated region
      $region17: #{exposure_mask_forward.2} parent=11 // pred_check
        %p137 = pneg %p91
      $region18: #{exposure_mask_forward.2} parent=11 // pred_check_branch
        %139 = sbr.rel (%p137) target = $region20
      $region19: #{exposure_mask_forward.2} parent=11 // pred_region
        _
      $region20: #{exposure_mask_forward.2} parent=11 // pred_fallthru
        _
    $region12: #{exposure_mask_forward.2} parent=5 // pred_fallthru
      _
    %p140 = scmp.lt.s32.totalorder %s9, 2
    // Predicated region
    $region21: #{exposure_mask_forward.2} parent=5 // pred_check
      %p141 = pneg %p140
    $region22: #{exposure_mask_forward.2} parent=5 // pred_check_branch
      %143 = sbr.rel (%p141) target = $region24
    $region23: #{exposure_mask_forward.2} parent=5 // pred_region
      // Predicated region
      $region25: #{exposure_mask_forward.2} parent=23 // pred_check
        %p144 = pneg %p43
      $region26: #{exposure_mask_forward.2} parent=23 // pred_check_branch
        %146 = sbr.rel (%p144) target = $region28
      $region27: #{exposure_mask_forward.2} parent=23 // pred_region
        %s147 = smul.u32 2, %s17
        %p148 = scmp.lt.s32.totalorder %s16, 1
        %s149 = scalar_select %p148, %s16, 1
        %p150 = scmp.lt.s32.totalorder %s147, 1
        %s151 = scalar_select %p150, %s147, 1
        %s152 = smul.addr %s149, 36
        %s153 = sadd.s32 %s151, %s152
        %s154 = smul.addr %s153, 4
        %s155 = scalar_lea.vmem %s0, %s154
        %s156 = smul.u32 2, %s17
      $region28: #{exposure_mask_forward.2} parent=23 // pred_fallthru
        _
    $region24: #{exposure_mask_forward.2} parent=5 // pred_fallthru
      _
    %p157 = scmp.le.s32.totalorder 1, %s9
    %p158 = scmp.lt.s32.totalorder %s9, 3
    %p159 = pnand %p157, %p158
    %p160 = pneg %p159
    // Predicated region
    $region29: #{exposure_mask_forward.2} parent=5 // pred_check
      _
    $region30: #{exposure_mask_forward.2} parent=5 // pred_check_branch
      %162 = sbr.rel (%p159) target = $region32
    $region31: #{exposure_mask_forward.2} parent=5 // pred_region
      %s163 = ssub.s32 %s9, 1
      %s164 = smul.u32 2, %s19
      %p165 = scmp.lt.s32.totalorder %s18, 1
      %s166 = scalar_select %p165, %s18, 1
      %p167 = scmp.lt.s32.totalorder %s164, 1
      %s168 = scalar_select %p167, %s164, 1
      %s169 = smul.addr %s166, 36
      %s170 = sadd.s32 %s168, %s169
      %s171 = smul.addr %s170, 4
      %s172 = scalar_lea.vmem %s0, %s171
      %p173 = pneg %p49
      %p174 = pneg %p46
      %p175 = pneg %p70
      %p176 = pneg %p67
      %p177 = pneg %p91
      %p178 = pneg %p88
      %p179 = pneg %p119
      %p180 = pneg %p116
      %s181 = smul.u32 2, %s19
      %p182 = scmp.lt.s32.totalorder %s18, 1
      %s183 = scalar_select %p182, %s18, 1
      %p184 = scmp.lt.s32.totalorder %s181, 1
      %s185 = scalar_select %p184, %s181, 1
      %s186 = smul.addr %s183, 2
      %s187 = sadd.s32 %s185, %s186
      %s188 = smul.addr %s187, 8
      %s189 = scalar_lea.vmem %s3, %s188
      %s190 = smul.u32 2, %s19
      %p191 = scmp.lt.s32.totalorder %s18, 1
      %s192 = scalar_select %p191, %s18, 1
      %p193 = scmp.lt.s32.totalorder %s190, 1
      %s194 = scalar_select %p193, %s190, 1
      %s195 = smul.addr %s192, 36
      %s196 = sadd.s32 %s194, %s195
      %s197 = smul.addr %s196, 4
      %s198 = scalar_lea.vmem %s0, %s197
      %s199 = smul.u32 2, %s19
      %s200 = smul.u32 2, %s19
      %p201 = scmp.lt.s32.totalorder %s18, 1
      %s202 = scalar_select %p201, %s18, 1
      %p203 = scmp.lt.s32.totalorder %s200, 1
      %s204 = scalar_select %p203, %s200, 1
      %s205 = smul.addr %s202, 2
      %s206 = sadd.s32 %s204, %s205
      %s207 = smul.addr %s206, 8
      %s208 = scalar_lea.vmem %s3, %s207
      %s209 = smul.u32 2, %s19
      %v211 = vld [vmem:[%s1] sm:$0xff]
      %v212 = vld [vmem:[%s198] sm:$0xff]
      %v213 = vld [vmem:[%s198 + $0x8] sm:$0xff]
      %v214 = vld [vmem:[%s198 + $0x10] sm:$0xff]
      %v215 = vld [vmem:[%s198 + $0x18] sm:$0xff]
      %v216 = vld [vmem:[%s198 + $0x20] sm:$0xff]
      %v217 = vld [vmem:[%s198 + $0x28] sm:$0xff]
      %v218 = vld [vmem:[%s198 + $0x30] sm:$0xff]
      %v219 = vld [vmem:[%s198 + $0x38] sm:$0xff]
      %v220 = vld [vmem:[%s198 + $0x40] sm:$0xff]
      %v221 = vld [vmem:[%s198 + $0x48] sm:$0xff]
      %v222 = vld [vmem:[%s198 + $0x50] sm:$0xff]
      %v223 = vld [vmem:[%s198 + $0x58] sm:$0xff]
      %v224 = vld [vmem:[%s198 + $0x60] sm:$0xff]
      %v225 = vld [vmem:[%s198 + $0x68] sm:$0xff]
      %v226 = vld [vmem:[%s198 + $0x70] sm:$0xff]
      %v227 = vld [vmem:[%s198 + $0x78] sm:$0xff]
      %v228 = vld [vmem:[%s198 + $0x80] sm:$0xff]
      %v229 = vld [vmem:[%s198 + $0x88] sm:$0xff]
      %v230 = vld [vmem:[%s2] sm:$0xff]
      %232 = vset.pattern.permute.xlu0 0
      %233 = vperm.xlu0 %232, %v230
      %v234 = vpop.permute.xlu0 %233
      %v237 = vunpack.c.l.b16 %v211
      %v238 = vunpack.c.h.b16 %v211
      %v239 = vpack.c.b16 %v237, %v237
      %v240 = vpack.c.b16 %v238, %v238
      %v260 = vunpack.c.l.b16 %v212
      %v261 = vunpack.c.h.b16 %v212
      %v262 = vunpack.c.l.b16 %v213
      %v263 = vunpack.c.h.b16 %v213
      %v264 = vunpack.c.l.b16 %v214
      %v265 = vunpack.c.h.b16 %v214
      %v266 = vunpack.c.l.b16 %v215
      %v267 = vunpack.c.h.b16 %v215
      %v268 = vunpack.c.l.b16 %v216
      %v269 = vunpack.c.h.b16 %v216
      %v270 = vunpack.c.l.b16 %v217
      %v271 = vunpack.c.h.b16 %v217
      %v272 = vunpack.c.l.b16 %v218
      %v273 = vunpack.c.h.b16 %v218
      %v274 = vunpack.c.l.b16 %v219
      %v275 = vunpack.c.h.b16 %v219
      %v276 = vunpack.c.l.b16 %v220
      %v277 = vunpack.c.h.b16 %v220
      %v278 = vunpack.c.l.b16 %v221
      %v279 = vunpack.c.h.b16 %v221
      %v280 = vunpack.c.l.b16 %v222
      %v281 = vunpack.c.h.b16 %v222
      %v282 = vunpack.c.l.b16 %v223
      %v283 = vunpack.c.h.b16 %v223
      %v284 = vunpack.c.l.b16 %v224
      %v285 = vunpack.c.h.b16 %v224
      %v286 = vunpack.c.l.b16 %v225
      %v287 = vunpack.c.h.b16 %v225
      %v288 = vunpack.c.l.b16 %v226
      %v289 = vunpack.c.h.b16 %v226
      %v290 = vunpack.c.l.b16 %v227
      %v291 = vunpack.c.h.b16 %v227
      %v292 = vunpack.c.l.b16 %v228
      %v293 = vunpack.c.h.b16 %v228
      %v294 = vunpack.c.l.b16 %v229
      %v295 = vunpack.c.h.b16 %v229
      %v296 = vpack.c.b16 %v262, %v260
      %v297 = vpack.c.b16 %v263, %v261
      %v298 = vpack.c.b16 %v266, %v264
      %v299 = vpack.c.b16 %v267, %v265
      %v300 = vpack.c.b16 %v270, %v268
      %v301 = vpack.c.b16 %v271, %v269
      %v302 = vpack.c.b16 %v274, %v272
      %v303 = vpack.c.b16 %v275, %v273
      %v304 = vpack.c.b16 %v278, %v276
      %v305 = vpack.c.b16 %v279, %v277
      %v306 = vpack.c.b16 %v282, %v280
      %v307 = vpack.c.b16 %v283, %v281
      %v308 = vpack.c.b16 %v286, %v284
      %v309 = vpack.c.b16 %v287, %v285
      %v310 = vpack.c.b16 %v290, %v288
      %v311 = vpack.c.b16 %v291, %v289
      %v312 = vpack.c.b16 %v294, %v292
      %v313 = vpack.c.b16 %v295, %v293
      %vm332 = vcmask 130048
      %v334 = vsel %vm332, %v240, 0
      %336 = vmatprep.subr.bf16.mxu0 %v297
      %337 = vmatpush1.bf16.msra.mxu0 %v296
      %338 = vmatprep.subr.bf16.mxu0 %v299
      %339 = vmatpush1.bf16.msra.mxu0 %v298
      %340 = vmatprep.subr.bf16.mxu0 %v301
      %341 = vmatpush1.bf16.msra.mxu0 %v300
      %342 = vmatprep.subr.bf16.mxu0 %v303
      %343 = vmatpush1.bf16.msra.mxu0 %v302
      %344 = vmatprep.subr.bf16.mxu0 %v305
      %345 = vmatpush1.bf16.msra.mxu0 %v304
      %346 = vmatprep.subr.bf16.mxu0 %v307
      %347 = vmatpush1.bf16.msra.mxu0 %v306
      %348 = vmatprep.subr.bf16.mxu0 %v309
      %349 = vmatpush1.bf16.msra.mxu0 %v308
      %350 = vmatprep.subr.bf16.mxu0 %v311
      %351 = vmatpush1.bf16.msra.mxu0 %v310
      %352 = vmatprep.subr.bf16.mxu0 %v313
      %353 = vmatpush1.bf16.msra.mxu0 %v312
      %354 = vmatprep.subr.bf16.mxu0 0
      %355 = vmatpush1.bf16.msra.mxu0 0
      %356 = vmatprep.subr.bf16.mxu0 0
      %357 = vmatpush1.bf16.msra.mxu0 0
      %358 = vmatprep.subr.bf16.mxu0 0
      %359 = vmatpush1.bf16.msra.mxu0 0
      %360 = vmatprep.subr.bf16.mxu0 0
      %361 = vmatpush1.bf16.msra.mxu0 0
      %362 = vmatprep.subr.bf16.mxu0 0
      %363 = vmatpush1.bf16.msra.mxu0 0
      %364 = vmatprep.subr.bf16.mxu0 0
      %365 = vmatpush1.bf16.msra.mxu0 0
      %366 = vmatprep.subr.bf16.mxu0 0
      %367 = vmatpush1.bf16.msra.mxu0 0
      %368 = vmatprep.mubr.bf16.mxu0 %v334
      %369 = vmatmul.mubr.bf16.gmra.mrb[0].mxu0 %v239
      %v370 = vpop.f32.mrb[0].mxu0
      %v371 = vadd.f32 %v234, %v370
      %v372 = vpop.f32.mrb[0].mxu0
      %v373 = vadd.f32 %v234, %v372
      %v374 = vpop.f32.mrb[0].mxu0
      %v375 = vpop.f32.mrb[0].mxu0
      %376 = vdwg.mxu0
      %377 = vst [vmem:[%s208] sm:$0xff] %v371
      %378 = vst [vmem:[%s208 + $0x8] sm:$0xff] %v373
      %s379 = smul.u32 2, %s19
      %p380 = scmp.lt.s32.totalorder %s18, 1
      %s381 = scalar_select %p380, %s18, 1
      %p382 = scmp.lt.s32.totalorder %s379, 1
      %s383 = scalar_select %p382, %s379, 1
      %s384 = smul.addr %s381, 2
      %s385 = sadd.s32 %s383, %s384
      %s386 = smul.addr %s385, 8
      %s387 = scalar_lea.vmem %s3, %s386
      // Predicated region
      $region33: #{exposure_mask_forward.2} parent=31 // pred_check
        %p388 = pneg %p116
      $region34: #{exposure_mask_forward.2} parent=31 // pred_check_branch
        %390 = sbr.rel (%p388) target = $region36
      $region35: #{exposure_mask_forward.2} parent=31 // pred_region
        %s391 = smul.u32 2, %s19
      $region36: #{exposure_mask_forward.2} parent=31 // pred_fallthru
        _
    $region32: #{exposure_mask_forward.2} parent=5 // pred_fallthru
      _
    %p392 = scmp.le.s32.totalorder 2, %s9
    // Predicated region
    $region37: #{exposure_mask_forward.2} parent=5 // pred_check
      %p393 = pneg %p392
    $region38: #{exposure_mask_forward.2} parent=5 // pred_check_branch
      %395 = sbr.rel (%p393) target = $region40
    $region39: #{exposure_mask_forward.2} parent=5 // pred_region
      %s396 = ssub.s32 %s9, 2
      // Predicated region
      $region41: #{exposure_mask_forward.2} parent=39 // pred_check
        %p397 = pneg %p122
      $region42: #{exposure_mask_forward.2} parent=39 // pred_check_branch
        %399 = sbr.rel (%p397) target = $region44
      $region43: #{exposure_mask_forward.2} parent=39 // pred_region
        %s400 = smul.u32 2, %s21
        %p401 = scmp.lt.s32.totalorder %s20, 1
        %s402 = scalar_select %p401, %s20, 1
        %p403 = scmp.lt.s32.totalorder %s400, 1
        %s404 = scalar_select %p403, %s400, 1
        %s405 = smul.addr %s402, 2
        %s406 = sadd.s32 %s404, %s405
        %s407 = smul.addr %s406, 8
        %s408 = scalar_lea.vmem %s3, %s407
      $region44: #{exposure_mask_forward.2} parent=39 // pred_fallthru
        _
    $region40: #{exposure_mask_forward.2} parent=5 // pred_fallthru
      _
  $region6: #{exposure_mask_forward.2} parent=0 // loop_footer
    %s13 = sadd.s32 1, %s9
  $region7: #{exposure_mask_forward.2} parent=0 // loop_footer_branch
    %8 = sbr.rel target = $region3
  $region8: #{exposure_mask_forward.2} parent=0 // loop_exit
    _

// kernel: exposure_mask_forward.3
$region0: #{exposure_mask_forward.3}
  #allocation0 [shape = 'u32[]', space=smem, size = 0x4, offset = 0x4, fixed_abs, tag = 'smem constant byte address 0x4 - core index']
  #allocation1 [shape = 'u32[144,128]{1,0:T(1,128)}', space=vmem, size = 0x12000, scoped, tag = 'internal scratch']
  #allocation2 [shape = 'f32[1,1]{1,0:T(1,128)S(1)}', space=vmem, size = 0x200, scoped, tag = 'scoped memory for exposure_mask_forward.3']
  %s0 = inlined_call_operand.vmem [shape: bf16[2,72,256], index: 0, kind: input, shape index: {}]
  %s1 = inlined_call_operand.vmem [shape: f32[2,8,256], index: 1, kind: input, shape index: {}]
  %s2 = inlined_call_operand.vmem [shape: f32[2,8,256], index: 2, kind: input, shape index: {}]
  %s3 = inlined_call_operand.vmem [shape: f32[72,1], index: 3, kind: input, shape index: {}]
  %s4 = inlined_call_operand.<no memory space> [shape: f32[1,1], index: 4, kind: input, shape index: {}]
  %s5 = inlined_call_operand.vmem [shape: bf16[8,8], index: 5, kind: input, shape index: {}]
  %s6 = inlined_call_operand.vmem [shape: bf16[8,8], index: 6, kind: input, shape index: {}]
  %s7 = inlined_call_operand.vmem [shape: bf16[8,8], index: 7, kind: input, shape index: {}]
  %s8 = inlined_call_operand.vmem [shape: bf16[8,8], index: 8, kind: input, shape index: {}]
  %s9 = inlined_call_operand.vmem [shape: f32[8,1], index: 9, kind: input, shape index: {}]
  %s10 = inlined_call_operand.vmem [shape: f32[8,8], index: 10, kind: input, shape index: {}]
  %s11 = inlined_call_operand.vmem [shape: f32[2,8,256], index: 11, kind: output, shape index: {}]
  %s12 = sld [smem:[#allocation0]]
  $region77: #{exposure_mask_forward.3} parent=0
    _
  %s14 = ssub.s32 1, %s12
  %s15 = scalar_select 0, %s14, %s12
  %v16 = vstv %s4
  %17 = vst [vmem:[#allocation2] sm:$0x1] %v16
  loop: start=0, step=1, limit=4
  $region2: #{exposure_mask_forward.3} parent=0 // loop_pre_header
    _
  $region3: #{exposure_mask_forward.3} parent=0 // loop_header
    %s19 = sphi 0, %s23
    %p20 = scmp.ge.s32.totalorder %s19, 4
    %s29 = sphi 0, %s31
    %s32 = sphi 0, %s29
    %s33 = sphi 0, %s32
    %s49 = sphi 0, %s33
    %s55 = sphi 0, %s57
    %s58 = sphi 0, %s55
    %s59 = sphi 0, %s58
    %s75 = sphi 0, %s59
    %s81 = sphi 0, %s83
    %s84 = sphi 0, %s81
    %s85 = sphi 0, %s84
    %s101 = sphi 0, %s85
    %s105 = sphi 0, %s105
    %s107 = sphi 0, %s105
    %s108 = sphi 0, %s107
    %s122 = sphi 0, %s108
    %s126 = sphi 0, %s126
    %s128 = sphi 0, %s126
    %s129 = sphi 0, %s128
    %s143 = sphi 0, %s129
    %s147 = sphi 0, %s147
    %s149 = sphi 0, %s147
    %s150 = sphi 0, %s149
    %s164 = sphi 0, %s150
    %s168 = sphi 0, %s168
    %s170 = sphi 0, %s168
    %s171 = sphi 0, %s170
    %s185 = sphi 0, %s171
    %s189 = sphi 0, %s189
    %s191 = sphi 0, %s189
    %s192 = sphi 0, %s191
    %s206 = sphi 0, %s192
    %s210 = sphi 0, %s210
    %s212 = sphi 0, %s210
    %s213 = sphi 0, %s212
    %s227 = sphi 0, %s213
    %s231 = sphi 0, %s231
    %s233 = sphi 0, %s231
    %s234 = sphi 0, %s233
    %s248 = sphi 0, %s234
    %s252 = sphi 0, %s252
    %s254 = sphi 0, %s252
    %s255 = sphi 0, %s254
    %s269 = sphi 0, %s255
    %s275 = sphi 0, %s277
    %s278 = sphi 0, %s275
    %s279 = sphi 0, %s278
    %s295 = sphi 0, %s279
  $region4: #{exposure_mask_forward.3} parent=0 // loop_header_branch
    %22 = sbr.rel (%p20) target = $region8
  $region5: #{exposure_mask_forward.3} parent=0 // loop_body
    %s24 = ssub.s32 %s19, 1
    %s25 = ssub.s32 %s19, 2
    %s26 = sadd.s32 %s19, 1
    %s27 = ssub.s32 %s19, %s26
    %p28 = scmp.eq.s32.totalorder %s27, 0
    %s30 = sadd.s32 %s29, 1
    %s31 = scalar_select %p28, %s29, %s30
    %p34 = pneg %p28
    %p35 = scmp.eq.s32.totalorder %s19, 1
    %p36 = por %p34, %p35
    %p37 = scmp.ne.s32.totalorder %s29, %s32
    %p38 = scmp.eq.s32.totalorder %s19, 0
    %p39 = por %p37, %p38
    %p40 = scmp.ne.s32.totalorder %s29, %s32
    %p41 = scmp.eq.s32.totalorder %s24, 1
    %p42 = por %p40, %p41
    %p43 = scmp.ne.s32.totalorder %s32, %s33
    %p44 = scmp.eq.s32.totalorder %s24, 0
    %p45 = por %p43, %p44
    %p46 = scmp.ne.s32.totalorder %s32, %s33
    %p47 = scmp.eq.s32.totalorder %s25, 1
    %p48 = por %p46, %p47
    %p50 = scmp.ne.s32.totalorder %s33, %s49
    %p51 = scmp.eq.s32.totalorder %s25, 0
    %p52 = por %p50, %p51
    %s53 = ssub.s32 %s19, %s26
    %p54 = scmp.eq.s32.totalorder %s53, 0
    %s56 = sadd.s32 %s55, 1
    %s57 = scalar_select %p54, %s55, %s56
    %p60 = pneg %p54
    %p61 = scmp.eq.s32.totalorder %s19, 1
    %p62 = por %p60, %p61
    %p63 = scmp.ne.s32.totalorder %s55, %s58
    %p64 = scmp.eq.s32.totalorder %s19, 0
    %p65 = por %p63, %p64
    %p66 = scmp.ne.s32.totalorder %s55, %s58
    %p67 = scmp.eq.s32.totalorder %s24, 1
    %p68 = por %p66, %p67
    %p69 = scmp.ne.s32.totalorder %s58, %s59
    %p70 = scmp.eq.s32.totalorder %s24, 0
    %p71 = por %p69, %p70
    %p72 = scmp.ne.s32.totalorder %s58, %s59
    %p73 = scmp.eq.s32.totalorder %s25, 1
    %p74 = por %p72, %p73
    %p76 = scmp.ne.s32.totalorder %s59, %s75
    %p77 = scmp.eq.s32.totalorder %s25, 0
    %p78 = por %p76, %p77
    %s79 = ssub.s32 %s19, %s26
    %p80 = scmp.eq.s32.totalorder %s79, 0
    %s82 = sadd.s32 %s81, 1
    %s83 = scalar_select %p80, %s81, %s82
    %p86 = pneg %p80
    %p87 = scmp.eq.s32.totalorder %s19, 1
    %p88 = por %p86, %p87
    %p89 = scmp.ne.s32.totalorder %s81, %s84
    %p90 = scmp.eq.s32.totalorder %s19, 0
    %p91 = por %p89, %p90
    %p92 = scmp.ne.s32.totalorder %s81, %s84
    %p93 = scmp.eq.s32.totalorder %s24, 1
    %p94 = por %p92, %p93
    %p95 = scmp.ne.s32.totalorder %s84, %s85
    %p96 = scmp.eq.s32.totalorder %s24, 0
    %p97 = por %p95, %p96
    %p98 = scmp.ne.s32.totalorder %s84, %s85
    %p99 = scmp.eq.s32.totalorder %s25, 1
    %p100 = por %p98, %p99
    %p102 = scmp.ne.s32.totalorder %s85, %s101
    %p103 = scmp.eq.s32.totalorder %s25, 0
    %p104 = por %p102, %p103
    %s106 = sadd.s32 %s105, 1
    %p109 = scmp.eq.s32.totalorder %s19, 1
    %p110 = scmp.ne.s32.totalorder %s105, %s107
    %p111 = scmp.eq.s32.totalorder %s19, 0
    %p112 = por %p110, %p111
    %p113 = scmp.ne.s32.totalorder %s105, %s107
    %p114 = scmp.eq.s32.totalorder %s24, 1
    %p115 = por %p113, %p114
    %p116 = scmp.ne.s32.totalorder %s107, %s108
    %p117 = scmp.eq.s32.totalorder %s24, 0
    %p118 = por %p116, %p117
    %p119 = scmp.ne.s32.totalorder %s107, %s108
    %p120 = scmp.eq.s32.totalorder %s25, 1
    %p121 = por %p119, %p120
    %p123 = scmp.ne.s32.totalorder %s108, %s122
    %p124 = scmp.eq.s32.totalorder %s25, 0
    %p125 = por %p123, %p124
    %s127 = sadd.s32 %s126, 1
    %p130 = scmp.eq.s32.totalorder %s19, 1
    %p131 = scmp.ne.s32.totalorder %s126, %s128
    %p132 = scmp.eq.s32.totalorder %s19, 0
    %p133 = por %p131, %p132
    %p134 = scmp.ne.s32.totalorder %s126, %s128
    %p135 = scmp.eq.s32.totalorder %s24, 1
    %p136 = por %p134, %p135
    %p137 = scmp.ne.s32.totalorder %s128, %s129
    %p138 = scmp.eq.s32.totalorder %s24, 0
    %p139 = por %p137, %p138
    %p140 = scmp.ne.s32.totalorder %s128, %s129
    %p141 = scmp.eq.s32.totalorder %s25, 1
    %p142 = por %p140, %p141
    %p144 = scmp.ne.s32.totalorder %s129, %s143
    %p145 = scmp.eq.s32.totalorder %s25, 0
    %p146 = por %p144, %p145
    %s148 = sadd.s32 %s147, 1
    %p151 = scmp.eq.s32.totalorder %s19, 1
    %p152 = scmp.ne.s32.totalorder %s147, %s149
    %p153 = scmp.eq.s32.totalorder %s19, 0
    %p154 = por %p152, %p153
    %p155 = scmp.ne.s32.totalorder %s147, %s149
    %p156 = scmp.eq.s32.totalorder %s24, 1
    %p157 = por %p155, %p156
    %p158 = scmp.ne.s32.totalorder %s149, %s150
    %p159 = scmp.eq.s32.totalorder %s24, 0
    %p160 = por %p158, %p159
    %p161 = scmp.ne.s32.totalorder %s149, %s150
    %p162 = scmp.eq.s32.totalorder %s25, 1
    %p163 = por %p161, %p162
    %p165 = scmp.ne.s32.totalorder %s150, %s164
    %p166 = scmp.eq.s32.totalorder %s25, 0
    %p167 = por %p165, %p166
    %s169 = sadd.s32 %s168, 1
    %p172 = scmp.eq.s32.totalorder %s19, 1
    %p173 = scmp.ne.s32.totalorder %s168, %s170
    %p174 = scmp.eq.s32.totalorder %s19, 0
    %p175 = por %p173, %p174
    %p176 = scmp.ne.s32.totalorder %s168, %s170
    %p177 = scmp.eq.s32.totalorder %s24, 1
    %p178 = por %p176, %p177
    %p179 = scmp.ne.s32.totalorder %s170, %s171
    %p180 = scmp.eq.s32.totalorder %s24, 0
    %p181 = por %p179, %p180
    %p182 = scmp.ne.s32.totalorder %s170, %s171
    %p183 = scmp.eq.s32.totalorder %s25, 1
    %p184 = por %p182, %p183
    %p186 = scmp.ne.s32.totalorder %s171, %s185
    %p187 = scmp.eq.s32.totalorder %s25, 0
    %p188 = por %p186, %p187
    %s190 = sadd.s32 %s189, 1
    %p193 = scmp.eq.s32.totalorder %s19, 1
    %p194 = scmp.ne.s32.totalorder %s189, %s191
    %p195 = scmp.eq.s32.totalorder %s19, 0
    %p196 = por %p194, %p195
    %p197 = scmp.ne.s32.totalorder %s189, %s191
    %p198 = scmp.eq.s32.totalorder %s24, 1
    %p199 = por %p197, %p198
    %p200 = scmp.ne.s32.totalorder %s191, %s192
    %p201 = scmp.eq.s32.totalorder %s24, 0
    %p202 = por %p200, %p201
    %p203 = scmp.ne.s32.totalorder %s191, %s192
    %p204 = scmp.eq.s32.totalorder %s25, 1
    %p205 = por %p203, %p204
    %p207 = scmp.ne.s32.totalorder %s192, %s206
    %p208 = scmp.eq.s32.totalorder %s25, 0
    %p209 = por %p207, %p208
    %s211 = sadd.s32 %s210, 1
    %p214 = scmp.eq.s32.totalorder %s19, 1
    %p215 = scmp.ne.s32.totalorder %s210, %s212
    %p216 = scmp.eq.s32.totalorder %s19, 0
    %p217 = por %p215, %p216
    %p218 = scmp.ne.s32.totalorder %s210, %s212
    %p219 = scmp.eq.s32.totalorder %s24, 1
    %p220 = por %p218, %p219
    %p221 = scmp.ne.s32.totalorder %s212, %s213
    %p222 = scmp.eq.s32.totalorder %s24, 0
    %p223 = por %p221, %p222
    %p224 = scmp.ne.s32.totalorder %s212, %s213
    %p225 = scmp.eq.s32.totalorder %s25, 1
    %p226 = por %p224, %p225
    %p228 = scmp.ne.s32.totalorder %s213, %s227
    %p229 = scmp.eq.s32.totalorder %s25, 0
    %p230 = por %p228, %p229
    %s232 = sadd.s32 %s231, 1
    %p235 = scmp.eq.s32.totalorder %s19, 1
    %p236 = scmp.ne.s32.totalorder %s231, %s233
    %p237 = scmp.eq.s32.totalorder %s19, 0
    %p238 = por %p236, %p237
    %p239 = scmp.ne.s32.totalorder %s231, %s233
    %p240 = scmp.eq.s32.totalorder %s24, 1
    %p241 = por %p239, %p240
    %p242 = scmp.ne.s32.totalorder %s233, %s234
    %p243 = scmp.eq.s32.totalorder %s24, 0
    %p244 = por %p242, %p243
    %p245 = scmp.ne.s32.totalorder %s233, %s234
    %p246 = scmp.eq.s32.totalorder %s25, 1
    %p247 = por %p245, %p246
    %p249 = scmp.ne.s32.totalorder %s234, %s248
    %p250 = scmp.eq.s32.totalorder %s25, 0
    %p251 = por %p249, %p250
    %s253 = sadd.s32 %s252, 1
    %p256 = scmp.eq.s32.totalorder %s19, 1
    %p257 = scmp.ne.s32.totalorder %s252, %s254
    %p258 = scmp.eq.s32.totalorder %s19, 0
    %p259 = por %p257, %p258
    %p260 = scmp.ne.s32.totalorder %s252, %s254
    %p261 = scmp.eq.s32.totalorder %s24, 1
    %p262 = por %p260, %p261
    %p263 = scmp.ne.s32.totalorder %s254, %s255
    %p264 = scmp.eq.s32.totalorder %s24, 0
    %p265 = por %p263, %p264
    %p266 = scmp.ne.s32.totalorder %s254, %s255
    %p267 = scmp.eq.s32.totalorder %s25, 1
    %p268 = por %p266, %p267
    %p270 = scmp.ne.s32.totalorder %s255, %s269
    %p271 = scmp.eq.s32.totalorder %s25, 0
    %p272 = por %p270, %p271
    %s273 = ssub.s32 %s19, %s26
    %p274 = scmp.eq.s32.totalorder %s273, 0
    %s276 = sadd.s32 %s275, 1
    %s277 = scalar_select %p274, %s275, %s276
    %p280 = pneg %p274
    %p281 = scmp.eq.s32.totalorder %s19, 1
    %p282 = por %p280, %p281
    %p283 = scmp.ne.s32.totalorder %s275, %s278
    %p284 = scmp.eq.s32.totalorder %s19, 0
    %p285 = por %p283, %p284
    %p286 = scmp.ne.s32.totalorder %s275, %s278
    %p287 = scmp.eq.s32.totalorder %s24, 1
    %p288 = por %p286, %p287
    %p289 = scmp.ne.s32.totalorder %s278, %s279
    %p290 = scmp.eq.s32.totalorder %s24, 0
    %p291 = por %p289, %p290
    %p292 = scmp.ne.s32.totalorder %s278, %s279
    %p293 = scmp.eq.s32.totalorder %s25, 1
    %p294 = por %p292, %p293
    %p296 = scmp.ne.s32.totalorder %s279, %s295
    %p297 = scmp.eq.s32.totalorder %s25, 0
    %p298 = por %p296, %p297
    %p299 = scmp.le.s32.totalorder 1, %s19
    %p300 = scmp.lt.s32.totalorder %s19, 3
    %p301 = pnand %p299, %p300
    %p302 = pneg %p301
    // Predicated region
    $region9: #{exposure_mask_forward.3} parent=5 // pred_check
      _
    $region10: #{exposure_mask_forward.3} parent=5 // pred_check_branch
      %304 = sbr.rel (%p301) target = $region12
    $region11: #{exposure_mask_forward.3} parent=5 // pred_region
      %s305 = ssub.s32 %s19, 1
      // Predicated region
      $region13: #{exposure_mask_forward.3} parent=11 // pred_check
        %p306 = pneg %p118
      $region14: #{exposure_mask_forward.3} parent=11 // pred_check_branch
        %308 = sbr.rel (%p306) target = $region16
      $region15: #{exposure_mask_forward.3} parent=11 // pred_region
        _
      $region16: #{exposure_mask_forward.3} parent=11 // pred_fallthru
        _
      // Predicated region
      $region17: #{exposure_mask_forward.3} parent=11 // pred_check
        %p309 = pneg %p139
      $region18: #{exposure_mask_forward.3} parent=11 // pred_check_branch
        %311 = sbr.rel (%p309) target = $region20
      $region19: #{exposure_mask_forward.3} parent=11 // pred_region
        _
      $region20: #{exposure_mask_forward.3} parent=11 // pred_fallthru
        _
      // Predicated region
      $region21: #{exposure_mask_forward.3} parent=11 // pred_check
        %p312 = pneg %p160
      $region22: #{exposure_mask_forward.3} parent=11 // pred_check_branch
        %314 = sbr.rel (%p312) target = $region24
      $region23: #{exposure_mask_forward.3} parent=11 // pred_region
        _
      $region24: #{exposure_mask_forward.3} parent=11 // pred_fallthru
        _
      // Predicated region
      $region25: #{exposure_mask_forward.3} parent=11 // pred_check
        %p315 = pneg %p181
      $region26: #{exposure_mask_forward.3} parent=11 // pred_check_branch
        %317 = sbr.rel (%p315) target = $region28
      $region27: #{exposure_mask_forward.3} parent=11 // pred_region
        _
      $region28: #{exposure_mask_forward.3} parent=11 // pred_fallthru
        _
      // Predicated region
      $region29: #{exposure_mask_forward.3} parent=11 // pred_check
        %p318 = pneg %p202
      $region30: #{exposure_mask_forward.3} parent=11 // pred_check_branch
        %320 = sbr.rel (%p318) target = $region32
      $region31: #{exposure_mask_forward.3} parent=11 // pred_region
        _
      $region32: #{exposure_mask_forward.3} parent=11 // pred_fallthru
        _
      // Predicated region
      $region33: #{exposure_mask_forward.3} parent=11 // pred_check
        %p321 = pneg %p223
      $region34: #{exposure_mask_forward.3} parent=11 // pred_check_branch
        %323 = sbr.rel (%p321) target = $region36
      $region35: #{exposure_mask_forward.3} parent=11 // pred_region
        _
      $region36: #{exposure_mask_forward.3} parent=11 // pred_fallthru
        _
      // Predicated region
      $region37: #{exposure_mask_forward.3} parent=11 // pred_check
        %p324 = pneg %p244
      $region38: #{exposure_mask_forward.3} parent=11 // pred_check_branch
        %326 = sbr.rel (%p324) target = $region40
      $region39: #{exposure_mask_forward.3} parent=11 // pred_region
        _
      $region40: #{exposure_mask_forward.3} parent=11 // pred_fallthru
        _
      // Predicated region
      $region41: #{exposure_mask_forward.3} parent=11 // pred_check
        %p327 = pneg %p265
      $region42: #{exposure_mask_forward.3} parent=11 // pred_check_branch
        %329 = sbr.rel (%p327) target = $region44
      $region43: #{exposure_mask_forward.3} parent=11 // pred_region
        _
      $region44: #{exposure_mask_forward.3} parent=11 // pred_fallthru
        _
    $region12: #{exposure_mask_forward.3} parent=5 // pred_fallthru
      _
    %p330 = scmp.lt.s32.totalorder %s19, 2
    // Predicated region
    $region45: #{exposure_mask_forward.3} parent=5 // pred_check
      %p331 = pneg %p330
    $region46: #{exposure_mask_forward.3} parent=5 // pred_check_branch
      %333 = sbr.rel (%p331) target = $region48
    $region47: #{exposure_mask_forward.3} parent=5 // pred_region
      // Predicated region
      $region49: #{exposure_mask_forward.3} parent=47 // pred_check
        %p334 = pneg %p39
      $region50: #{exposure_mask_forward.3} parent=47 // pred_check_branch
        %336 = sbr.rel (%p334) target = $region52
      $region51: #{exposure_mask_forward.3} parent=47 // pred_region
        %p337 = scmp.lt.s32.totalorder %s19, 1
        %s338 = scalar_select %p337, %s19, 1
        %s339 = smul.addr %s338, 18
        %s340 = smul.addr %s339, 4
        %s341 = scalar_lea.vmem %s0, %s340
      $region52: #{exposure_mask_forward.3} parent=47 // pred_fallthru
        _
      // Predicated region
      $region53: #{exposure_mask_forward.3} parent=47 // pred_check
        %p342 = pneg %p65
      $region54: #{exposure_mask_forward.3} parent=47 // pred_check_branch
        %344 = sbr.rel (%p342) target = $region56
      $region55: #{exposure_mask_forward.3} parent=47 // pred_region
        %p345 = scmp.lt.s32.totalorder %s19, 1
        %s346 = scalar_select %p345, %s19, 1
        %s347 = smul.addr %s346, 2
        %s348 = smul.addr %s347, 8
        %s349 = scalar_lea.vmem %s1, %s348
      $region56: #{exposure_mask_forward.3} parent=47 // pred_fallthru
        _
      // Predicated region
      $region57: #{exposure_mask_forward.3} parent=47 // pred_check
        %p350 = pneg %p91
      $region58: #{exposure_mask_forward.3} parent=47 // pred_check_branch
        %352 = sbr.rel (%p350) target = $region60
      $region59: #{exposure_mask_forward.3} parent=47 // pred_region
        %p353 = scmp.lt.s32.totalorder %s19, 1
        %s354 = scalar_select %p353, %s19, 1
        %s355 = smul.addr %s354, 2
        %s356 = smul.addr %s355, 8
        %s357 = scalar_lea.vmem %s2, %s356
      $region60: #{exposure_mask_forward.3} parent=47 // pred_fallthru
        _
    $region48: #{exposure_mask_forward.3} parent=5 // pred_fallthru
      _
    %p358 = scmp.le.s32.totalorder 1, %s19
    %p359 = scmp.lt.s32.totalorder %s19, 3
    %p360 = pnand %p358, %p359
    %p361 = pneg %p360
    // Predicated region
    $region61: #{exposure_mask_forward.3} parent=5 // pred_check
      _
    $region62: #{exposure_mask_forward.3} parent=5 // pred_check_branch
      %363 = sbr.rel (%p360) target = $region64
    $region63: #{exposure_mask_forward.3} parent=5 // pred_region
      %s364 = ssub.s32 %s19, 1
      %p365 = scmp.lt.s32.totalorder %s24, 1
      %s366 = scalar_select %p365, %s24, 1
      %s367 = smul.addr %s366, 18
      %s368 = smul.addr %s367, 4
      %s369 = scalar_lea.vmem %s0, %s368
      %p370 = pneg %p45
      %p371 = pneg %p42
      %p372 = scmp.lt.s32.totalorder %s24, 1
      %s373 = scalar_select %p372, %s24, 1
      %s374 = smul.addr %s373, 2
      %s375 = smul.addr %s374, 8
      %s376 = scalar_lea.vmem %s1, %s375
      %p377 = pneg %p71
      %p378 = pneg %p68
      %p379 = scmp.lt.s32.totalorder %s24, 1
      %s380 = scalar_select %p379, %s24, 1
      %s381 = smul.addr %s380, 2
      %s382 = smul.addr %s381, 8
      %s383 = scalar_lea.vmem %s2, %s382
      %p384 = pneg %p97
      %p385 = pneg %p94
      %p386 = pneg %p118
      %p387 = pneg %p115
      %p388 = pneg %p139
      %p389 = pneg %p136
      %p390 = pneg %p160
      %p391 = pneg %p157
      %p392 = pneg %p181
      %p393 = pneg %p178
      %p394 = pneg %p202
      %p395 = pneg %p199
      %p396 = pneg %p223
      %p397 = pneg %p220
      %p398 = pneg %p244
      %p399 = pneg %p241
      %p400 = pneg %p265
      %p401 = pneg %p262
      %p402 = pneg %p291
      %p403 = pneg %p288
      %p404 = scmp.lt.s32.totalorder %s24, 1
      %s405 = scalar_select %p404, %s24, 1
      %s406 = smul.addr %s405, 2
      %s407 = smul.addr %s406, 8
      %s408 = scalar_lea.vmem %s11, %s407
      %p409 = scmp.lt.s32.totalorder %s24, 1
      %s410 = scalar_select %p409, %s24, 1
      %s411 = smul.addr %s410, 18
      %s412 = smul.addr %s411, 4
      %s413 = scalar_lea.vmem %s0, %s412
      %p414 = scmp.lt.s32.totalorder %s24, 1
      %s415 = scalar_select %p414, %s24, 1
      %s416 = smul.addr %s415, 2
      %s417 = smul.addr %s416, 8
      %s418 = scalar_lea.vmem %s1, %s417
      %p419 = scmp.lt.s32.totalorder %s24, 1
      %s420 = scalar_select %p419, %s24, 1
      %s421 = smul.addr %s420, 2
      %s422 = smul.addr %s421, 8
      %s423 = scalar_lea.vmem %s2, %s422
      %p424 = scmp.lt.s32.totalorder %s24, 1
      %s425 = scalar_select %p424, %s24, 1
      %s426 = smul.addr %s425, 2
      %s427 = smul.addr %s426, 8
      %s428 = scalar_lea.vmem %s11, %s427
      %v430 = vld [vmem:[%s413] sm:$0xff]
      %v431 = vld [vmem:[%s413 + $0x8] sm:$0xff]
      %v432 = vld [vmem:[%s413 + $0x10] sm:$0xff]
      %v433 = vld [vmem:[%s413 + $0x18] sm:$0xff]
      %v434 = vld [vmem:[%s413 + $0x20] sm:$0xff]
      %v435 = vld [vmem:[%s413 + $0x28] sm:$0xff]
      %v436 = vld [vmem:[%s413 + $0x30] sm:$0xff]
      %v437 = vld [vmem:[%s413 + $0x38] sm:$0xff]
      %v438 = vld [vmem:[%s413 + $0x40] sm:$0xff]
      %v439 = vunpack.c.l.bf16 %v430
      %v440 = vunpack.c.h.bf16 %v430
      %v441 = vunpack.c.l.bf16 %v431
      %v442 = vunpack.c.h.bf16 %v431
      %v443 = vunpack.c.l.bf16 %v432
      %v444 = vunpack.c.h.bf16 %v432
      %v445 = vunpack.c.l.bf16 %v433
      %v446 = vunpack.c.h.bf16 %v433
      %v447 = vunpack.c.l.bf16 %v434
      %v448 = vunpack.c.h.bf16 %v434
      %v449 = vunpack.c.l.bf16 %v435
      %v450 = vunpack.c.h.bf16 %v435
      %v451 = vunpack.c.l.bf16 %v436
      %v452 = vunpack.c.h.bf16 %v436
      %v453 = vunpack.c.l.bf16 %v437
      %v454 = vunpack.c.h.bf16 %v437
      %v455 = vunpack.c.l.bf16 %v438
      %v456 = vunpack.c.h.bf16 %v438
      %v457 = vld [vmem:[%s3] sm:$0xff]
      %v458 = vld [vmem:[%s3 + $0x8] sm:$0xff]
      %v459 = vld [vmem:[%s3 + $0x10] sm:$0xff]
      %v460 = vld [vmem:[%s3 + $0x18] sm:$0xff]
      %v461 = vld [vmem:[%s3 + $0x20] sm:$0xff]
      %v462 = vld [vmem:[%s3 + $0x28] sm:$0xff]
      %v463 = vld [vmem:[%s3 + $0x30] sm:$0xff]
      %v464 = vld [vmem:[%s3 + $0x38] sm:$0xff]
      %v465 = vld [vmem:[%s3 + $0x40] sm:$0xff]
      %467 = vset.pattern.permute.xlu0 0
      %468 = vperm.xlu0 %467, %v457
      %v469 = vpop.permute.xlu0 %468
      %472 = vset.pattern.permute.xlu0 0
      %473 = vperm.xlu0 %472, %v458
      %v474 = vpop.permute.xlu0 %473
      %477 = vset.pattern.permute.xlu0 0
      %478 = vperm.xlu0 %477, %v459
      %v479 = vpop.permute.xlu0 %478
      %482 = vset.pattern.permute.xlu0 0
      %483 = vperm.xlu0 %482, %v460
      %v484 = vpop.permute.xlu0 %483
      %487 = vset.pattern.permute.xlu0 0
      %488 = vperm.xlu0 %487, %v461
      %v489 = vpop.permute.xlu0 %488
      %492 = vset.pattern.permute.xlu0 0
      %493 = vperm.xlu0 %492, %v462
      %v494 = vpop.permute.xlu0 %493
      %497 = vset.pattern.permute.xlu0 0
      %498 = vperm.xlu0 %497, %v463
      %v499 = vpop.permute.xlu0 %498
      %502 = vset.pattern.permute.xlu0 0
      %503 = vperm.xlu0 %502, %v464
      %v504 = vpop.permute.xlu0 %503
      %507 = vset.pattern.permute.xlu0 0
      %508 = vperm.xlu0 %507, %v465
      %v509 = vpop.permute.xlu0 %508
      %v511 = vmul.f32 %v439, %v469
      %v512 = vmul.f32 %v440, %v469
      %v513 = vmul.f32 %v441, %v474
      %v514 = vmul.f32 %v442, %v474
      %v515 = vmul.f32 %v443, %v479
      %v516 = vmul.f32 %v444, %v479
      %v517 = vmul.f32 %v445, %v484
      %v518 = vmul.f32 %v446, %v484
      %v519 = vmul.f32 %v447, %v489
      %v520 = vmul.f32 %v448, %v489
      %v521 = vmul.f32 %v449, %v494
      %v522 = vmul.f32 %v450, %v494
      %v523 = vmul.f32 %v451, %v499
      %v524 = vmul.f32 %v452, %v499
      %v525 = vmul.f32 %v453, %v504
      %v526 = vmul.f32 %v454, %v504
      %v527 = vmul.f32 %v455, %v509
      %v528 = vmul.f32 %v456, %v509
      %v529 = vadd.f32 %v511, %v513
      %v530 = vadd.f32 %v529, %v515
      %v531 = vadd.f32 %v530, %v517
      %v532 = vadd.f32 %v531, %v519
      %v533 = vadd.f32 %v532, %v521
      %v534 = vadd.f32 %v533, %v523
      %v535 = vadd.f32 %v534, %v525
      %v536 = vadd.f32 %v535, %v527
      %v537 = vrot.slane %v536, 4
      %v538 = vadd.f32 %v536, %v537
      %v539 = vrot.slane %v538, 2
      %v540 = vadd.f32 %v538, %v539
      %v541 = vrot.slane %v540, 1
      %v542 = vadd.f32 %v540, %v541
      %v543 = vadd.f32 %v512, %v514
      %v544 = vadd.f32 %v543, %v516
      %v545 = vadd.f32 %v544, %v518
      %v546 = vadd.f32 %v545, %v520
      %v547 = vadd.f32 %v546, %v522
      %v548 = vadd.f32 %v547, %v524
      %v549 = vadd.f32 %v548, %v526
      %v550 = vadd.f32 %v549, %v528
      %v551 = vrot.slane %v550, 4
      %v552 = vadd.f32 %v550, %v551
      %v553 = vrot.slane %v552, 2
      %v554 = vadd.f32 %v552, %v553
      %v555 = vrot.slane %v554, 1
      %v556 = vadd.f32 %v554, %v555
      %v557 = vld [vmem:[#allocation2] sm:$0x1]
      %559 = vset.pattern.permute.xlu0 0
      %560 = vperm.xlu0 %559, %v557
      %v561 = vpop.permute.xlu0 %560
      %v563 = vlaneseq
      %v564 = vshrl.u32 %v563, 7
      %v565 = vsub.s32 0, %v564
      %v566 = vrot.slane %v561, %v565
      %v567 = vadd.f32 %v542, %v566
      %v568 = vadd.f32 %v556, %v566
      %v569 = vld [vmem:[%s418] sm:$0xff]
      %v570 = vld [vmem:[%s418 + $0x8] sm:$0xff]
      %v571 = vmul.f32 %v569, %v567
      %v572 = vmul.f32 %v570, %v568
      %v573 = vld [vmem:[%s423] sm:$0xff]
      %v574 = vld [vmem:[%s423 + $0x8] sm:$0xff]
      %v575 = vpack.c.bf16 %v573, %v573
      %v576 = vpack.c.bf16 %v574, %v574
      %v577 = vpack.c.bf16 %v571, %v571
      %v578 = vpack.c.bf16 %v572, %v572
      %v579 = vld [vmem:[%s5] sm:$0xf]
      %vm580 = vcmask 64512
      %v582 = vsel %vm580, %v579, 0
      %vm584 = vcmask 1043456
      %v586 = vsel %vm584, %v575, 0
      %v589 = vsel %vm584, %v576, 0
      %591 = vmatprep.subr.bf16.mxu0 %v589
      %592 = vmatpush1.bf16.msra.mxu0 %v586
      %593 = vmatprep.subr.bf16.mxu0 0
      %594 = vmatpush1.bf16.msra.mxu0 0
      %595 = vmatprep.subr.bf16.mxu0 0
      %596 = vmatpush1.bf16.msra.mxu0 0
      %597 = vmatprep.subr.bf16.mxu0 0
      %598 = vmatpush1.bf16.msra.mxu0 0
      %599 = vmatprep.subr.bf16.mxu0 0
      %600 = vmatpush1.bf16.msra.mxu0 0
      %601 = vmatprep.subr.bf16.mxu0 0
      %602 = vmatpush1.bf16.msra.mxu0 0
      %603 = vmatprep.subr.bf16.mxu0 0
      %604 = vmatpush1.bf16.msra.mxu0 0
      %605 = vmatprep.subr.bf16.mxu0 0
      %606 = vmatpush1.bf16.msra.mxu0 0
      %607 = vmatprep.subr.bf16.mxu0 0
      %608 = vmatpush1.bf16.msra.mxu0 0
      %609 = vmatprep.subr.bf16.mxu0 0
      %610 = vmatpush1.bf16.msra.mxu0 0
      %611 = vmatprep.subr.bf16.mxu0 0
      %612 = vmatpush1.bf16.msra.mxu0 0
      %613 = vmatprep.subr.bf16.mxu0 0
      %614 = vmatpush1.bf16.msra.mxu0 0
      %615 = vmatprep.subr.bf16.mxu0 0
      %616 = vmatpush1.bf16.msra.mxu0 0
      %617 = vmatprep.subr.bf16.mxu0 0
      %618 = vmatpush1.bf16.msra.mxu0 0
      %619 = vmatprep.subr.bf16.mxu0 0
      %620 = vmatpush1.bf16.msra.mxu0 0
      %621 = vmatprep.subr.bf16.mxu0 0
      %622 = vmatpush1.bf16.msra.mxu0 0
      %623 = vmatprep.mubr.bf16.mxu0 0
      %624 = vmatmul.mubr.bf16.gmra.mrb[0].mxu0 %v582
      %v625 = vpop.f32.mrb[0].mxu0
      %v626 = vadd.f32 0.0, %v625
      %v627 = vpop.f32.mrb[0].mxu0
      %v628 = vadd.f32 0.0, %v627
      %v629 = vpop.f32.mrb[0].mxu0
      %v630 = vpop.f32.mrb[0].mxu0
      %631 = vdwg.mxu0
      %v632 = vld [vmem:[%s6] sm:$0xf]
      %v634 = vsel %vm580, %v632, 0
      %v637 = vsel %vm584, %v577, 0
      %v640 = vsel %vm584, %v578, 0
      %642 = vmatprep.subr.bf16.mxu0 %v640
      %643 = vmatpush1.bf16.msra.mxu0 %v637
      %644 = vmatprep.subr.bf16.mxu0 0
      %645 = vmatpush1.bf16.msra.mxu0 0
      %646 = vmatprep.subr.bf16.mxu0 0
      %647 = vmatpush1.bf16.msra.mxu0 0
      %648 = vmatprep.subr.bf16.mxu0 0
      %649 = vmatpush1.bf16.msra.mxu0 0
      %650 = vmatprep.subr.bf16.mxu0 0
      %651 = vmatpush1.bf16.msra.mxu0 0
      %652 = vmatprep.subr.bf16.mxu0 0
      %653 = vmatpush1.bf16.msra.mxu0 0
      %654 = vmatprep.subr.bf16.mxu0 0
      %655 = vmatpush1.bf16.msra.mxu0 0
      %656 = vmatprep.subr.bf16.mxu0 0
      %657 = vmatpush1.bf16.msra.mxu0 0
      %658 = vmatprep.subr.bf16.mxu0 0
      %659 = vmatpush1.bf16.msra.mxu0 0
      %660 = vmatprep.subr.bf16.mxu0 0
      %661 = vmatpush1.bf16.msra.mxu0 0
      %662 = vmatprep.subr.bf16.mxu0 0
      %663 = vmatpush1.bf16.msra.mxu0 0
      %664 = vmatprep.subr.bf16.mxu0 0
      %665 = vmatpush1.bf16.msra.mxu0 0
      %666 = vmatprep.subr.bf16.mxu0 0
      %667 = vmatpush1.bf16.msra.mxu0 0
      %668 = vmatprep.subr.bf16.mxu0 0
      %669 = vmatpush1.bf16.msra.mxu0 0
      %670 = vmatprep.subr.bf16.mxu0 0
      %671 = vmatpush1.bf16.msra.mxu0 0
      %672 = vmatprep.subr.bf16.mxu0 0
      %673 = vmatpush1.bf16.msra.mxu0 0
      %674 = vmatprep.mubr.bf16.mxu0 0
      %675 = vmatmul.mubr.bf16.gmra.mrb[0].mxu0 %v634
      %v676 = vpop.f32.mrb[0].mxu0
      %v677 = vadd.f32 0.0, %v676
      %v678 = vpop.f32.mrb[0].mxu0
      %v679 = vadd.f32 0.0, %v678
      %v680 = vpop.f32.mrb[0].mxu0
      %v681 = vpop.f32.mrb[0].mxu0
      %682 = vdwg.mxu0
      %v683 = vld [vmem:[%s7] sm:$0xf]
      %v685 = vsel %vm580, %v683, 0
      %687 = vmatprep.subr.bf16.mxu0 %v640
      %688 = vmatpush1.bf16.msra.mxu0 %v637
      %689 = vmatprep.subr.bf16.mxu0 0
      %690 = vmatpush1.bf16.msra.mxu0 0
      %691 = vmatprep.subr.bf16.mxu0 0
      %692 = vmatpush1.bf16.msra.mxu0 0
      %693 = vmatprep.subr.bf16.mxu0 0
      %694 = vmatpush1.bf16.msra.mxu0 0
      %695 = vmatprep.subr.bf16.mxu0 0
      %696 = vmatpush1.bf16.msra.mxu0 0
      %697 = vmatprep.subr.bf16.mxu0 0
      %698 = vmatpush1.bf16.msra.mxu0 0
      %699 = vmatprep.subr.bf16.mxu0 0
      %700 = vmatpush1.bf16.msra.mxu0 0
      %701 = vmatprep.subr.bf16.mxu0 0
      %702 = vmatpush1.bf16.msra.mxu0 0
      %703 = vmatprep.subr.bf16.mxu0 0
      %704 = vmatpush1.bf16.msra.mxu0 0
      %705 = vmatprep.subr.bf16.mxu0 0
      %706 = vmatpush1.bf16.msra.mxu0 0
      %707 = vmatprep.subr.bf16.mxu0 0
      %708 = vmatpush1.bf16.msra.mxu0 0
      %709 = vmatprep.subr.bf16.mxu0 0
      %710 = vmatpush1.bf16.msra.mxu0 0
      %711 = vmatprep.subr.bf16.mxu0 0
      %712 = vmatpush1.bf16.msra.mxu0 0
      %713 = vmatprep.subr.bf16.mxu0 0
      %714 = vmatpush1.bf16.msra.mxu0 0
      %715 = vmatprep.subr.bf16.mxu0 0
      %716 = vmatpush1.bf16.msra.mxu0 0
      %717 = vmatprep.subr.bf16.mxu0 0
      %718 = vmatpush1.bf16.msra.mxu0 0
      %719 = vmatprep.mubr.bf16.mxu0 0
      %720 = vmatmul.mubr.bf16.gmra.mrb[0].mxu0 %v685
      %v721 = vpop.f32.mrb[0].mxu0
      %v722 = vadd.f32 0.0, %v721
      %v723 = vpop.f32.mrb[0].mxu0
      %v724 = vadd.f32 0.0, %v723
      %v725 = vpop.f32.mrb[0].mxu0
      %v726 = vpop.f32.mrb[0].mxu0
      %727 = vdwg.mxu0
      %v728 = vmul.f32 %v626, %v626
      %v729 = vmul.f32 %v628, %v628
      %v730 = vadd.f32 %v728, %v729
      %731 = vadd.xlane.f32.xlu0 %v730
      %v732 = vpop.xlane.xlu0 %731
      %v733 = vmax.f32 %v732, 1e-24
      %v734 = vrsqrt.pop %v733
      %v735 = vmul.f32 %v626, %v734
      %v736 = vmul.f32 %v628, %v734
      %v737 = vmul.f32 %v677, %v677
      %v738 = vmul.f32 %v679, %v679
      %v739 = vadd.f32 %v737, %v738
      %740 = vadd.xlane.f32.xlu0 %v739
      %v741 = vpop.xlane.xlu0 %740
      %v742 = vmax.f32 %v741, 1e-24
      %v743 = vrsqrt.pop %v742
      %v744 = vmul.f32 %v677, %v743
      %v745 = vmul.f32 %v679, %v743
      %v746 = vpack.c.bf16 %v735, %v735
      %v747 = vpack.c.bf16 %v736, %v736
      %v748 = vpack.c.bf16 %v744, %v744
      %v749 = vpack.c.bf16 %v745, %v745
      %750 = vmatprep.subr.bf16.mxu0 %v749
      %751 = vmatpush1.bf16.xpose.msra.mxu0 %v748
      %752 = vmatprep.subr.bf16.mxu0 0
      %753 = vmatpush1.bf16.xpose.msra.mxu0 0
      %754 = vmatprep.subr.bf16.mxu0 0
      %755 = vmatpush1.bf16.xpose.msra.mxu0 0
      %756 = vmatprep.subr.bf16.mxu0 0
      %757 = vmatpush1.bf16.xpose.msra.mxu0 0
      %758 = vmatprep.subr.bf16.mxu0 0
      %759 = vmatpush1.bf16.xpose.msra.mxu0 0
      %760 = vmatprep.subr.bf16.mxu0 0
      %761 = vmatpush1.bf16.xpose.msra.mxu0 0
      %762 = vmatprep.subr.bf16.mxu0 0
      %763 = vmatpush1.bf16.xpose.msra.mxu0 0
      %764 = vmatprep.subr.bf16.mxu0 0
      %765 = vmatpush1.bf16.xpose.msra.mxu0 0
      %766 = vmatprep.subr.bf16.mxu0 0
      %767 = vmatpush1.bf16.xpose.msra.mxu0 0
      %768 = vmatprep.subr.bf16.mxu0 0
      %769 = vmatpush1.bf16.xpose.msra.mxu0 0
      %770 = vmatprep.subr.bf16.mxu0 0
      %771 = vmatpush1.bf16.xpose.msra.mxu0 0
      %772 = vmatprep.subr.bf16.mxu0 0
      %773 = vmatpush1.bf16.xpose.msra.mxu0 0
      %774 = vmatprep.subr.bf16.mxu0 0
      %775 = vmatpush1.bf16.xpose.msra.mxu0 0
      %776 = vmatprep.subr.bf16.mxu0 0
      %777 = vmatpush1.bf16.xpose.msra.mxu0 0
      %778 = vmatprep.subr.bf16.mxu0 0
      %779 = vmatpush1.bf16.xpose.msra.mxu0 0
      %780 = vmatprep.subr.bf16.mxu0 0
      %781 = vmatpush1.bf16.xpose.msra.mxu0 0
      %782 = vmatprep.mubr.bf16.mxu0 %v747
      %783 = vmatmul.mubr.bf16.gmra.mrb[0].mxu0 %v746
      %v784 = vpop.f32.mrb[0].mxu0
      %v785 = vadd.f32 0.0, %v784
      %v786 = vpop.f32.mrb[0].mxu0
      %v787 = vpop.f32.mrb[0].mxu0
      %v788 = vpop.f32.mrb[0].mxu0
      %789 = vdwg.mxu0
      %v790 = vld [vmem:[%s9] sm:$0xff]
      %792 = vset.pattern.permute.xlu0 0
      %793 = vperm.xlu0 %792, %v790
      %v794 = vpop.permute.xlu0 %793
      %v796 = vmul.f32 %v785, %v794
      %v797 = vld [vmem:[%s10] sm:$0xff]
      %v798 = vadd.f32 %v796, %v797
      %v799 = vsel %vm580, %v798, -inf
      %800 = vmax.xlane.f32.xlu0 %v799
      %v801 = vpop.xlane.xlu0 %800
      %v802 = vsub.f32 %v798, %v801
      %v803 = vmul.f32 %v802, 1.442695
      %v804 = vpow.pop %v803
      %v805 = vsel %vm580, %v804, 0.0
      %806 = vadd.xlane.f32.xlu0 %v805
      %v807 = vpop.xlane.xlu0 %806
      %v808 = vrcp.pop %v807
      %v809 = vmul.f32 %v804, %v808
      %v810 = vpack.c.bf16 %v809, %v809
      %v811 = vpack.c.bf16 %v722, %v722
      %v812 = vpack.c.bf16 %v724, %v724
      %v814 = vsel %vm580, %v810, 0
      %v817 = vsel %vm584, %v811, 0
      %v820 = vsel %vm584, %v812, 0
      %822 = vmatprep.subr.bf16.mxu0 %v820
      %823 = vmatpush1.bf16.msra.mxu0 %v817
      %824 = vmatprep.subr.bf16.mxu0 0
      %825 = vmatpush1.bf16.msra.mxu0 0
      %826 = vmatprep.subr.bf16.mxu0 0
      %827 = vmatpush1.bf16.msra.mxu0 0
      %828 = vmatprep.subr.bf16.mxu0 0
      %829 = vmatpush1.bf16.msra.mxu0 0
      %830 = vmatprep.subr.bf16.mxu0 0
      %831 = vmatpush1.bf16.msra.mxu0 0
      %832 = vmatprep.subr.bf16.mxu0 0
      %833 = vmatpush1.bf16.msra.mxu0 0
      %834 = vmatprep.subr.bf16.mxu0 0
      %835 = vmatpush1.bf16.msra.mxu0 0
      %836 = vmatprep.subr.bf16.mxu0 0
      %837 = vmatpush1.bf16.msra.mxu0 0
      %838 = vmatprep.subr.bf16.mxu0 0
      %839 = vmatpush1.bf16.msra.mxu0 0
      %840 = vmatprep.subr.bf16.mxu0 0
      %841 = vmatpush1.bf16.msra.mxu0 0
      %842 = vmatprep.subr.bf16.mxu0 0
      %843 = vmatpush1.bf16.msra.mxu0 0
      %844 = vmatprep.subr.bf16.mxu0 0
      %845 = vmatpush1.bf16.msra.mxu0 0
      %846 = vmatprep.subr.bf16.mxu0 0
      %847 = vmatpush1.bf16.msra.mxu0 0
      %848 = vmatprep.subr.bf16.mxu0 0
      %849 = vmatpush1.bf16.msra.mxu0 0
      %850 = vmatprep.subr.bf16.mxu0 0
      %851 = vmatpush1.bf16.msra.mxu0 0
      %852 = vmatprep.subr.bf16.mxu0 0
      %853 = vmatpush1.bf16.msra.mxu0 0
      %854 = vmatprep.mubr.bf16.mxu0 0
      %855 = vmatmul.mubr.bf16.gmra.mrb[0].mxu0 %v814
      %v856 = vpop.f32.mrb[0].mxu0
      %v857 = vadd.f32 0.0, %v856
      %v858 = vpop.f32.mrb[0].mxu0
      %v859 = vadd.f32 0.0, %v858
      %v860 = vpop.f32.mrb[0].mxu0
      %v861 = vpop.f32.mrb[0].mxu0
      %862 = vdwg.mxu0
      %v863 = vld [vmem:[%s8] sm:$0xf]
      %v864 = vpack.c.bf16 %v857, %v857
      %v865 = vpack.c.bf16 %v859, %v859
      %v867 = vsel %vm580, %v863, 0
      %v870 = vsel %vm584, %v864, 0
      %v873 = vsel %vm584, %v865, 0
      %875 = vmatprep.subr.bf16.mxu0 %v873
      %876 = vmatpush1.bf16.msra.mxu0 %v870
      %877 = vmatprep.subr.bf16.mxu0 0
      %878 = vmatpush1.bf16.msra.mxu0 0
      %879 = vmatprep.subr.bf16.mxu0 0
      %880 = vmatpush1.bf16.msra.mxu0 0
      %881 = vmatprep.subr.bf16.mxu0 0
      %882 = vmatpush1.bf16.msra.mxu0 0
      %883 = vmatprep.subr.bf16.mxu0 0
      %884 = vmatpush1.bf16.msra.mxu0 0
      %885 = vmatprep.subr.bf16.mxu0 0
      %886 = vmatpush1.bf16.msra.mxu0 0
      %887 = vmatprep.subr.bf16.mxu0 0
      %888 = vmatpush1.bf16.msra.mxu0 0
      %889 = vmatprep.subr.bf16.mxu0 0
      %890 = vmatpush1.bf16.msra.mxu0 0
      %891 = vmatprep.subr.bf16.mxu0 0
      %892 = vmatpush1.bf16.msra.mxu0 0
      %893 = vmatprep.subr.bf16.mxu0 0
      %894 = vmatpush1.bf16.msra.mxu0 0
      %895 = vmatprep.subr.bf16.mxu0 0
      %896 = vmatpush1.bf16.msra.mxu0 0
      %897 = vmatprep.subr.bf16.mxu0 0
      %898 = vmatpush1.bf16.msra.mxu0 0
      %899 = vmatprep.subr.bf16.mxu0 0
      %900 = vmatpush1.bf16.msra.mxu0 0
      %901 = vmatprep.subr.bf16.mxu0 0
      %902 = vmatpush1.bf16.msra.mxu0 0
      %903 = vmatprep.subr.bf16.mxu0 0
      %904 = vmatpush1.bf16.msra.mxu0 0
      %905 = vmatprep.subr.bf16.mxu0 0
      %906 = vmatpush1.bf16.msra.mxu0 0
      %907 = vmatprep.mubr.bf16.mxu0 0
      %908 = vmatmul.mubr.bf16.gmra.mrb[0].mxu0 %v867
      %v909 = vpop.f32.mrb[0].mxu0
      %v910 = vadd.f32 0.0, %v909
      %v911 = vpop.f32.mrb[0].mxu0
      %v912 = vadd.f32 0.0, %v911
      %v913 = vpop.f32.mrb[0].mxu0
      %v914 = vpop.f32.mrb[0].mxu0
      %915 = vdwg.mxu0
      %916 = vst [vmem:[%s428] sm:$0xff] %v910
      %917 = vst [vmem:[%s428 + $0x8] sm:$0xff] %v912
      %p918 = scmp.lt.s32.totalorder %s24, 1
      %s919 = scalar_select %p918, %s24, 1
      %s920 = smul.addr %s919, 2
      %s921 = smul.addr %s920, 8
      %s922 = scalar_lea.vmem %s11, %s921
      // Predicated region
      $region65: #{exposure_mask_forward.3} parent=63 // pred_check
        %p923 = pneg %p288
      $region66: #{exposure_mask_forward.3} parent=63 // pred_check_branch
        %925 = sbr.rel (%p923) target = $region68
      $region67: #{exposure_mask_forward.3} parent=63 // pred_region
        _
      $region68: #{exposure_mask_forward.3} parent=63 // pred_fallthru
        _
    $region64: #{exposure_mask_forward.3} parent=5 // pred_fallthru
      _
    %p926 = scmp.le.s32.totalorder 2, %s19
    // Predicated region
    $region69: #{exposure_mask_forward.3} parent=5 // pred_check
      %p927 = pneg %p926
    $region70: #{exposure_mask_forward.3} parent=5 // pred_check_branch
      %929 = sbr.rel (%p927) target = $region72
    $region71: #{exposure_mask_forward.3} parent=5 // pred_region
      %s930 = ssub.s32 %s19, 2
      // Predicated region
      $region73: #{exposure_mask_forward.3} parent=71 // pred_check
        %p931 = pneg %p294
      $region74: #{exposure_mask_forward.3} parent=71 // pred_check_branch
        %933 = sbr.rel (%p931) target = $region76
      $region75: #{exposure_mask_forward.3} parent=71 // pred_region
        %p934 = scmp.lt.s32.totalorder %s25, 1
        %s935 = scalar_select %p934, %s25, 1
        %s936 = smul.addr %s935, 2
        %s937 = smul.addr %s936, 8
        %s938 = scalar_lea.vmem %s11, %s937
      $region76: #{exposure_mask_forward.3} parent=71 // pred_fallthru
        _
    $region72: #{exposure_mask_forward.3} parent=5 // pred_fallthru
      _
  $region6: #{exposure_mask_forward.3} parent=0 // loop_footer
    %s23 = sadd.s32 1, %s19
  $region7: #{exposure_mask_forward.3} parent=0 // loop_footer_branch
    %18 = sbr.rel target = $region3
  $region8: #{exposure_mask_forward.3} parent=0 // loop_exit
    _

</llo_original>
